<compile_context>
chip_gen: v7x
topology: tpu7x:2x2x1
jax: 0.10.0
libtpu: 0.0.40
codegen_flags: <defaults>
</compile_context>

<pallas_src>
import functools
import numpy as np
import jax
import jax.numpy as jnp
from jax.experimental import pallas as pl
from jax.experimental.pallas import tpu as pltpu


# ----------------------- minimal irreps machinery (host glue) -----------------------
def parse_irreps(s):
    out = []
    for term in s.replace(" ", "").split("+"):
        mul_s, ir_s = term.split("x")
        l = int(ir_s[:-1])
        p = 1 if ir_s[-1] == "e" else -1
        out.append((int(mul_s), (l, p)))
    return out


def ir_dim(ir):
    return 2 * ir[0] + 1


def irreps_dim(irreps):
    return sum(mul * ir_dim(ir) for mul, ir in irreps)


def irreps_slices(irreps):
    out, off = [], 0
    for mul, ir in irreps:
        out.append(off)
        off += mul * ir_dim(ir)
    return out


def in_product(ir1, ir2, ir3):
    (l1, p1), (l2, p2), (l3, p3) = ir1, ir2, ir3
    return (abs(l1 - l2) <= l3 <= l1 + l2) and (p3 == p1 * p2)


def wigner3j(l1, l2, l3):
    # Real-basis Wigner-3j for l <= 1 (fixed, self-consistent sign convention).
    key = (l1, l2, l3)
    if key == (0, 0, 0):
        return np.ones((1, 1, 1), np.float64)
    if key == (0, 1, 1):
        return (np.eye(3) / np.sqrt(3.0))[None, :, :]
    if key == (1, 0, 1):
        return (np.eye(3) / np.sqrt(3.0))[:, None, :]
    if key == (1, 1, 0):
        return (np.eye(3) / np.sqrt(3.0))[:, :, None]
    if key == (1, 1, 1):
        eps = np.zeros((3, 3, 3), np.float64)
        for a, b, c, s in [(0, 1, 2, 1), (1, 2, 0, 1), (2, 0, 1, 1),
                           (0, 2, 1, -1), (2, 1, 0, -1), (1, 0, 2, -1)]:
            eps[a, b, c] = s
        return eps / np.sqrt(6.0)
    # TODO(synk): general Wigner-3j (l > 1) not included in this synthetic script.
    raise NotImplementedError(key)


def _round_up(x, m):
    return ((x + m - 1) // m) * m


# --------------------------------- kernel --------------------------------------
def _tp_kernel(x12_ref, wcat_ref, p_ref, out_ref, *, cols_pad):
    # One 256-wide MXU matmul replaces the two 128-wide packed matmuls
    # (x12 = [x1|x2] bf16, Wcat = blockdiag(W1e, W2e) bf16). f32 accumulation.
    ab = jnp.dot(x12_ref[...], wcat_ref[...], preferred_element_type=jnp.float32)
    # Static, lane-aligned (multiple-of-128) split; multiply stays f32 (v5e-friendly).
    r = ab[:, :cols_pad] * ab[:, cols_pad:]
    # Placement matmul carries pw * C[i,j,k]; cast r to bf16 only here (single MXU pass).
    out_ref[...] = jnp.dot(r.astype(jnp.bfloat16), p_ref[...],
                           preferred_element_type=jnp.float32).astype(out_ref.dtype)


# ----------------------------- module equivalent --------------------------------
class SeparateWeightTensorProductPallas:
    def __init__(self, irreps_in1, irreps_in2, irreps_out, key):
        self.irreps_in1 = parse_irreps(irreps_in1)
        self.irreps_in2 = parse_irreps(irreps_in2)
        self.irreps_out = parse_irreps(irreps_out)
        self.dim_in1 = irreps_dim(self.irreps_in1)
        self.dim_in2 = irreps_dim(self.irreps_in2)
        self.dim_in12 = self.dim_in1 + self.dim_in2
        self.dim_out = irreps_dim(self.irreps_out)
        s1_off = irreps_slices(self.irreps_in1)
        s2_off = irreps_slices(self.irreps_in2)
        so_off = irreps_slices(self.irreps_out)

        # Build instructions + separable weights exactly like the torch __init__.
        instr, weights1, weights2 = [], [], []
        for i1, (mul1, ir1) in enumerate(self.irreps_in1):
            for i2, (mul2, ir2) in enumerate(self.irreps_in2):
                for i_out, (mul_out, ir3) in enumerate(self.irreps_out):
                    if in_product(ir1, ir2, ir3):
                        key, k1, k2 = jax.random.split(key, 3)
                        weights1.append(jax.random.normal(k1, (mul1, mul_out), jnp.float32))
                        weights2.append(jax.random.normal(k2, (mul2, mul_out), jnp.float32))
                        instr.append((i1, i2, i_out))
        self.weights1, self.weights2 = weights1, weights2

        # e3nn path weights (irrep_normalization='component', path_normalization='element').
        fan = {}
        for (i1, i2, io) in instr:
            fan[io] = fan.get(io, 0.0) + self.irreps_in1[i1][0] * self.irreps_in2[i2][0]

        meta, cols = [], 0
        for (i1, i2, io) in instr:
            mul1, ir1 = self.irreps_in1[i1]
            mul2, ir2 = self.irreps_in2[i2]
            mulo, iro = self.irreps_out[io]
            d1, d2, d3 = ir_dim(ir1), ir_dim(ir2), ir_dim(iro)
            C = wigner3j(ir1[0], ir2[0], iro[0])
            pairs = [(i, j) for i in range(d1) for j in range(d2)
                     if np.any(np.abs(C[i, j, :]) > 0.0)]
            meta.append(dict(
                s1=s1_off[i1], s2=s2_off[i2], so=so_off[io],
                mul1=mul1, mul2=mul2, mul_out=mulo,
                d1=d1, d2=d2, d3=d3, C=C,
                pw=float(np.sqrt(d3 / fan[io])),
                pairs=pairs, offP=cols))
            cols += len(pairs) * mulo
        self.meta = meta

        # Lane-dense widths: packed width and output width padded to multiples of 128.
        self.cols = cols
        self.cols_pad = _round_up(max(cols, 1), 128)
        self.dim_out_pad = _round_up(self.dim_out, 128)

        # Packed "selection * weight" matrices and placement matrix P (pw*C folded in).
        W1e = np.zeros((self.dim_in1, self.cols_pad), np.float32)
        W2e = np.zeros((self.dim_in2, self.cols_pad), np.float32)
        P = np.zeros((self.cols_pad, self.dim_out_pad), np.float32)
        for m, w1, w2 in zip(meta, weights1, weights2):
            w1 = np.asarray(w1)
            w2 = np.asarray(w2)
            mo = m["mul_out"]
            for p, (i, j) in enumerate(m["pairs"]):
                c0 = m["offP"] + p * mo
                for u in range(m["mul1"]):
                    W1e[m["s1"] + u * m["d1"] + i, c0:c0 + mo] = w1[u]
                for v in range(m["mul2"]):
                    W2e[m["s2"] + v * m["d2"] + j, c0:c0 + mo] = w2[v]
                for k in range(m["d3"]):
                    c = float(m["C"][i, j, k])
                    if c == 0.0:
                        continue
                    for w in range(mo):
                        P[c0 + w, m["so"] + w * m["d3"] + k] += m["pw"] * c

        # Fused block-diagonal weight for the single 256-wide matmul; bf16 operands
        # guarantee single-pass MXU and halve weight HBM/VMEM bytes.
        Wcat = np.zeros((self.dim_in12, 2 * self.cols_pad), np.float32)
        Wcat[:self.dim_in1, :self.cols_pad] = W1e
        Wcat[self.dim_in1:, self.cols_pad:] = W2e
        self.Wcat = jnp.asarray(Wcat, dtype=jnp.bfloat16)
        self.P = jnp.asarray(P, dtype=jnp.bfloat16)

    # ---------------- pallas launch ----------------
    def _launch(self, x12, tz, out_dtype, single_buffer_weights):
        N = x12.shape[0]
        grid = (pl.cdiv(N, tz),)
        wkw = dict(pipeline_mode=pl.Buffered(1)) if single_buffer_weights else {}

        cost = pl.CostEstimate(
            flops=int(2 * N * (self.dim_in12 * 2 * self.cols_pad
                               + self.cols_pad * self.dim_out_pad)
                      + N * self.cols_pad),
            transcendentals=0,
            bytes_accessed=int(2 * N * self.dim_in12
                               + 2 * (self.dim_in12 * 2 * self.cols_pad
                                      + self.cols_pad * self.dim_out_pad)
                               + N * self.dim_out_pad * jnp.dtype(out_dtype).itemsize),
        )

        return pl.pallas_call(
            functools.partial(_tp_kernel, cols_pad=self.cols_pad),
            out_shape=jax.ShapeDtypeStruct((N, self.dim_out_pad), out_dtype),
            grid=grid,
            in_specs=[
                # NOTE: if a profile ever shows exposed DMA on this thin input stream,
                # bump its buffering (pl.Buffered(3)) rather than shrinking tz.
                pl.BlockSpec((tz, self.dim_in12), lambda i: (i, 0)),
                # Grid-invariant weights (constant block index -> no re-DMA), single-buffered.
                pl.BlockSpec((self.dim_in12, 2 * self.cols_pad), lambda i: (0, 0), **wkw),
                pl.BlockSpec((self.cols_pad, self.dim_out_pad), lambda i: (0, 0), **wkw),
            ],
            out_specs=pl.BlockSpec((tz, self.dim_out_pad), lambda i: (i, 0)),
            compiler_params=pltpu.CompilerParams(
                dimension_semantics=("parallel",)),
            cost_estimate=cost,
        )(x12, self.Wcat, self.P)

    def __call__(self, x1, x2, tz=2048, out_dtype=jnp.float32, trim=True):
        N = x1.shape[0]
        # Fuse the inputs for the 256-wide matmul and cast to bf16 once (halves input bytes).
        x12 = jnp.concatenate([x1, x2], axis=1).astype(jnp.bfloat16)

        # Big batch tiles, clamped so the "parallel" grid keeps >= 2 steps (v7x megacore)
        # and stays 16-row aligned for bf16 tiles. No row padding: cdiv grid + masked edge.
        tz = max(16, min(int(tz), _round_up(pl.cdiv(N, 2), 16)))
        tz = _round_up(tz, 16)

        try:
            out = self._launch(x12, tz, out_dtype, single_buffer_weights=True)
        except Exception:
            # TODO(synk): pl.Buffered(1) not accepted by this JAX version; default buffering.
            out = self._launch(x12, tz, out_dtype, single_buffer_weights=False)

        if trim:
            out = out[:, :self.dim_out]
        return out


# --------------------------- references --------------------------------
def reference_numpy(x1, x2, mod):
    """f64 reference of the module semantics (f32 master weights)."""
    x1 = np.asarray(x1, np.float64)
    x2 = np.asarray(x2, np.float64)
    N = x1.shape[0]
    out = np.zeros((N, mod.dim_out), np.float64)
    for m, w1, w2 in zip(mod.meta, mod.weights1, mod.weights2):
        w1 = np.asarray(w1, np.float64)
        w2 = np.asarray(w2, np.float64)
        x1b = x1[:, m["s1"]:m["s1"] + m["mul1"] * m["d1"]].reshape(N, m["mul1"], m["d1"])
        x2b = x2[:, m["s2"]:m["s2"] + m["mul2"] * m["d2"]].reshape(N, m["mul2"], m["d2"])
        w = w1[:, None, :] * w2[None, :, :]   # (mul1, mul2, mul_out) == weight.view(-1)
        res = m["pw"] * np.einsum("uvw,ijk,zui,zvj->zwk", w, m["C"], x1b, x2b)
        out[:, m["so"]:m["so"] + m["mul_out"] * m["d3"]] += res.reshape(N, -1)
    return out


def _bf16_round(a):
    return np.asarray(jnp.asarray(np.asarray(a, np.float32)).astype(jnp.bfloat16)
                      .astype(jnp.float32))


def packed_reference_numpy(x1, x2, mod):
    """Exact numpy emulation of the packed bf16 pipeline (tight packing check)."""
    x12 = _bf16_round(np.concatenate([np.asarray(x1), np.asarray(x2)], axis=1))
    Wcat = np.asarray(mod.Wcat.astype(jnp.float32), np.float64)
    P = np.asarray(mod.P.astype(jnp.float32), np.float64)
    ab = x12.astype(np.float64) @ Wcat
    r = ab[:, :mod.cols_pad] * ab[:, mod.cols_pad:]
    r = _bf16_round(r.astype(np.float32)).astype(np.float64)
    return (r @ P).astype(np.float32)


if __name__ == "__main__":
    key = jax.random.PRNGKey(0)
    key, kmod, kx1, kx2 = jax.random.split(key, 4)

    irreps_in1 = "4x0e + 4x1o"
    irreps_in2 = "3x0e + 3x1o"
    irreps_out = "5x0e + 5x1o + 2x1e"

    mod = SeparateWeightTensorProductPallas(irreps_in1, irreps_in2, irreps_out, kmod)

    # N deliberately not a multiple of the tile (or of 8): exercises the no-pad cdiv grid
    # with a masked ragged edge tile; tz clamps to 256 so the "parallel" grid has 2 steps.
    N = 500
    x1 = jax.random.normal(kx1, (N, mod.dim_in1), jnp.float32)   # (500, 16)
    x2 = jax.random.normal(kx2, (N, mod.dim_in2), jnp.float32)   # (500, 12)

    # Optimized deployment path: bf16 output, lane-dense padded buffer (consumer slices).
    out_fast = jax.block_until_ready(mod(x1, x2, out_dtype=jnp.bfloat16, trim=False))
    # Parity path: f32 output, trimmed to the logical output width.
    out_f32 = jax.block_until_ready(mod(x1, x2, out_dtype=jnp.float32, trim=True))

    ref64 = reference_numpy(x1, x2, mod)
    ref_packed = packed_reference_numpy(x1, x2, mod)

    out_f32_np = np.asarray(out_f32)
    out_fast_np = np.asarray(out_fast.astype(jnp.float32))

    # 1) Tight check of the packing/placement against the exact bf16-pipeline emulation.
    np.testing.assert_allclose(out_f32_np, ref_packed[:, :mod.dim_out],
                               rtol=1e-2, atol=1e-2)
    # 2) Semantic check (bf16 single-pass matmuls vs f64 reference).
    np.testing.assert_allclose(out_f32_np, ref64, rtol=5e-2, atol=5e-2)
    # 3) Per-output-irrep relative-norm check (guards small-magnitude irrep blocks).
    off = 0
    for mul, ir in mod.irreps_out:
        w = mul * ir_dim(ir)
        num = np.linalg.norm(out_f32_np[:, off:off + w] - ref64[:, off:off + w])
        den = max(np.linalg.norm(ref64[:, off:off + w]), 1e-12)
        assert num / den < 3e-2, (mul, ir, num / den)
        off += w
    # 4) Fast (bf16-out, padded) path: consumer-side slice, looser tolerance; padding exact 0.
    assert np.all(out_fast_np[:, mod.dim_out:] == 0.0)
    np.testing.assert_allclose(out_fast_np[:, :mod.dim_out], ref64, rtol=6e-2, atol=6e-2)

    print("KERNEL_OK")
</pallas_src>

<mosaic_0001>
module attributes {stable_mosaic.version = 11 : i64} {
  func.func @_tp_kernel(%arg0: i32, %arg1: memref<256x28xbf16, #tpu.memory_space<vmem>>, %arg2: memref<28x256xbf16, #tpu.memory_space<vmem>>, %arg3: memref<128x128xbf16, #tpu.memory_space<vmem>>, %arg4: memref<256x128xbf16, #tpu.memory_space<vmem>>) attributes {dimension_semantics = [#tpu.dimension_semantics<parallel>], iteration_bounds = array<i64: 2>, scalar_prefetch = 0 : i64, scratch_operands = 0 : i64, tpu.core_type = #tpu.core_type<tc>, window_params = [{transform_indices = @transform_0, window_bounds = array<i64: 256, 28>}, {pipeline_mode = #tpu.pipeline_mode<synchronous>, transform_indices = @transform_1, window_bounds = array<i64: 28, 256>}, {pipeline_mode = #tpu.pipeline_mode<synchronous>, transform_indices = @transform_2, window_bounds = array<i64: 128, 128>}, {transform_indices = @transform_3, window_bounds = array<i64: 256, 128>}]} {
    %c0 = arith.constant 0 : index
    %c0_0 = arith.constant 0 : index
    %0 = vector.load %arg1[%c0, %c0_0] : memref<256x28xbf16, #tpu.memory_space<vmem>>, vector<256x28xbf16>
    %c0_1 = arith.constant 0 : index
    %c0_2 = arith.constant 0 : index
    %1 = vector.load %arg2[%c0_1, %c0_2] : memref<28x256xbf16, #tpu.memory_space<vmem>>, vector<28x256xbf16>
    %cst = arith.constant dense<0.000000e+00> : vector<256x256xf32>
    %2 = tpu.matmul %0, %1, %cst {dimension_numbers = #tpu.dot_dimension_numbers<[1], [0], [0], [1], [0, 0, 1, 1], [], []>} : vector<256x28xbf16>, vector<28x256xbf16>, vector<256x256xf32> -> vector<256x256xf32>
    %3 = vector.extract_strided_slice %2 {offsets = [0, 0], sizes = [256, 128], strides = [1, 1]} : vector<256x256xf32> to vector<256x128xf32>
    %4 = vector.extract_strided_slice %2 {offsets = [0, 128], sizes = [256, 128], strides = [1, 1]} : vector<256x256xf32> to vector<256x128xf32>
    %5 = arith.mulf %3, %4 : vector<256x128xf32>
    %6 = arith.truncf %5 : vector<256x128xf32> to vector<256x128xbf16>
    %c0_3 = arith.constant 0 : index
    %c0_4 = arith.constant 0 : index
    %7 = vector.load %arg3[%c0_3, %c0_4] : memref<128x128xbf16, #tpu.memory_space<vmem>>, vector<128x128xbf16>
    %cst_5 = arith.constant dense<0.000000e+00> : vector<256x128xf32>
    %8 = tpu.matmul %6, %7, %cst_5 {dimension_numbers = #tpu.dot_dimension_numbers<[1], [0], [0], [1], [0, 0, 1, 1], [], []>} : vector<256x128xbf16>, vector<128x128xbf16>, vector<256x128xf32> -> vector<256x128xf32>
    %9 = arith.truncf %8 : vector<256x128xf32> to vector<256x128xbf16>
    %c0_6 = arith.constant 0 : index
    %c0_7 = arith.constant 0 : index
    %10 = vector.load %arg4[%c0_6, %c0_7] : memref<256x128xbf16, #tpu.memory_space<vmem>>, vector<256x128xbf16>
    tpu.vector_store %arg4[%c0_6, %c0_7], %9 {strides = array<i32>} : memref<256x128xbf16, #tpu.memory_space<vmem>>, vector<256x128xbf16>,
    return
  }
  func.func @transform_0(%arg0: i32) -> (i32, i32) {
    %c0_i32 = arith.constant 0 : i32
    %c0_i32_0 = arith.constant 0 : i32
    return %arg0, %c0_i32 : i32, i32
  }
  func.func @transform_1(%arg0: i32) -> (i32, i32) {
    %c0_i32 = arith.constant 0 : i32
    %c0_i32_0 = arith.constant 0 : i32
    %c0_i32_1 = arith.constant 0 : i32
    return %c0_i32, %c0_i32_0 : i32, i32
  }
  func.func @transform_2(%arg0: i32) -> (i32, i32) {
    %c0_i32 = arith.constant 0 : i32
    %c0_i32_0 = arith.constant 0 : i32
    %c0_i32_1 = arith.constant 0 : i32
    return %c0_i32, %c0_i32_0 : i32, i32
  }
  func.func @transform_3(%arg0: i32) -> (i32, i32) {
    %c0_i32 = arith.constant 0 : i32
    %c0_i32_0 = arith.constant 0 : i32
    return %arg0, %c0_i32 : i32, i32
  }
}

module attributes {stable_mosaic.version = 11 : i64} {
  func.func @_tp_kernel(%arg0: i32, %arg1: memref<256x28xbf16, #tpu.memory_space<vmem>>, %arg2: memref<28x256xbf16, #tpu.memory_space<vmem>>, %arg3: memref<128x128xbf16, #tpu.memory_space<vmem>>, %arg4: memref<256x128xbf16, #tpu.memory_space<vmem>>) attributes {dimension_semantics = [#tpu.dimension_semantics<parallel>], iteration_bounds = array<i64: 2>, scalar_prefetch = 0 : i64, scratch_operands = 0 : i64, tpu.core_type = #tpu.core_type<tc>, window_params = [{transform_indices = @transform_0, window_bounds = array<i64: 256, 28>}, {pipeline_mode = #tpu.pipeline_mode<synchronous>, transform_indices = @transform_1, window_bounds = array<i64: 28, 256>}, {pipeline_mode = #tpu.pipeline_mode<synchronous>, transform_indices = @transform_2, window_bounds = array<i64: 128, 128>}, {transform_indices = @transform_3, window_bounds = array<i64: 256, 128>}]} {
    %c0 = arith.constant 0 : index
    %c0_0 = arith.constant 0 : index
    %0 = vector.load %arg1[%c0, %c0_0] : memref<256x28xbf16, #tpu.memory_space<vmem>>, vector<256x28xbf16>
    %c0_1 = arith.constant 0 : index
    %c0_2 = arith.constant 0 : index
    %1 = vector.load %arg2[%c0_1, %c0_2] : memref<28x256xbf16, #tpu.memory_space<vmem>>, vector<28x256xbf16>
    %cst = arith.constant dense<0.000000e+00> : vector<256x256xf32>
    %2 = tpu.matmul %0, %1, %cst {dimension_numbers = #tpu.dot_dimension_numbers<[1], [0], [0], [1], [0, 0, 1, 1], [], []>} : vector<256x28xbf16>, vector<28x256xbf16>, vector<256x256xf32> -> vector<256x256xf32>
    %3 = vector.extract_strided_slice %2 {offsets = [0, 0], sizes = [256, 128], strides = [1, 1]} : vector<256x256xf32> to vector<256x128xf32>
    %4 = vector.extract_strided_slice %2 {offsets = [0, 128], sizes = [256, 128], strides = [1, 1]} : vector<256x256xf32> to vector<256x128xf32>
    %5 = arith.mulf %3, %4 : vector<256x128xf32>
    %6 = arith.truncf %5 : vector<256x128xf32> to vector<256x128xbf16>
    %c0_3 = arith.constant 0 : index
    %c0_4 = arith.constant 0 : index
    %7 = vector.load %arg3[%c0_3, %c0_4] : memref<128x128xbf16, #tpu.memory_space<vmem>>, vector<128x128xbf16>
    %cst_5 = arith.constant dense<0.000000e+00> : vector<256x128xf32>
    %8 = tpu.matmul %6, %7, %cst_5 {dimension_numbers = #tpu.dot_dimension_numbers<[1], [0], [0], [1], [0, 0, 1, 1], [], []>} : vector<256x128xbf16>, vector<128x128xbf16>, vector<256x128xf32> -> vector<256x128xf32>
    %9 = arith.truncf %8 : vector<256x128xf32> to vector<256x128xbf16>
    %c0_6 = arith.constant 0 : index
    %c0_7 = arith.constant 0 : index
    %10 = vector.load %arg4[%c0_6, %c0_7] : memref<256x128xbf16, #tpu.memory_space<vmem>>, vector<256x128xbf16>
    tpu.vector_store %arg4[%c0_6, %c0_7], %9 {strides = array<i32>} : memref<256x128xbf16, #tpu.memory_space<vmem>>, vector<256x128xbf16>,
    return
  }
  func.func @transform_0(%arg0: i32) -> (i32, i32) {
    %c0_i32 = arith.constant 0 : i32
    %c0_i32_0 = arith.constant 0 : i32
    return %arg0, %c0_i32 : i32, i32
  }
  func.func @transform_1(%arg0: i32) -> (i32, i32) {
    %c0_i32 = arith.constant 0 : i32
    %c0_i32_0 = arith.constant 0 : i32
    %c0_i32_1 = arith.constant 0 : i32
    return %c0_i32, %c0_i32_0 : i32, i32
  }
  func.func @transform_2(%arg0: i32) -> (i32, i32) {
    %c0_i32 = arith.constant 0 : i32
    %c0_i32_0 = arith.constant 0 : i32
    %c0_i32_1 = arith.constant 0 : i32
    return %c0_i32, %c0_i32_0 : i32, i32
  }
  func.func @transform_3(%arg0: i32) -> (i32, i32) {
    %c0_i32 = arith.constant 0 : i32
    %c0_i32_0 = arith.constant 0 : i32
    return %arg0, %c0_i32 : i32, i32
  }
}

</mosaic_0001>

<llo_original>
// kernel: tpu_custom_call.1
$region0: #{tpu_custom_call.1}
  #allocation0 [shape = 'u32[]', space=smem, size = 0x4, offset = 0x4, fixed_abs, tag = 'smem constant byte address 0x4 - core index']
  #allocation1 [shape = 'u32[144,128]{1,0:T(1,128)}', space=vmem, size = 0x12000, scoped, tag = 'internal scratch']
  %s0 = inlined_call_operand.vmem [shape: bf16[500,28], index: 0, kind: input, shape index: {}]
  %s1 = inlined_call_operand.vmem [shape: bf16[28,256], index: 1, kind: input, shape index: {}]
  %s2 = inlined_call_operand.vmem [shape: bf16[128,128], index: 2, kind: input, shape index: {}]
  %s3 = inlined_call_operand.hbm [shape: bf16[500,128], index: 3, kind: output, shape index: {}]
  %s4 = sld [smem:[#allocation0]]
  $region45: #{tpu_custom_call.1} parent=0
    _
  %s6 = ssub.s32 1, %s4
  %s7 = scalar_select 0, %s6, %s4
  $region1: #{tpu_custom_call.1} parent=0
    #allocation2 [shape = 'u8[131072]{0}', space=vmem, size = 0x20000, scoped, tag = 'output window, operand 0']
    #allocation3 [shape = 's32[2]{0}', space=sflag, size = 0x8, scoped, tag = 'scoped memory for tpu_custom_call.1']
    %8 = vsyncpa [#allocation3], 0
    %s9 = scalar_lea.sflag [#allocation3], 1
    %10 = vsyncpa %s9, 0
    loop: start=0, step=1, limit=4
    $region2: #{tpu_custom_call.1} parent=1 // loop_pre_header
      _
    $region3: #{tpu_custom_call.1} parent=1 // loop_header
      %s12 = sphi 0, %s16
      %p13 = scmp.ge.s32.totalorder %s12, 4
      %s22 = sphi 0, %s24
      %s25 = sphi 0, %s22
      %s26 = sphi 0, %s25
      %s42 = sphi 0, %s26
      %s46 = sphi 0, %s46
      %s48 = sphi 0, %s46
      %s49 = sphi 0, %s48
      %s63 = sphi 0, %s49
      %s67 = sphi 0, %s67
      %s69 = sphi 0, %s67
      %s70 = sphi 0, %s69
      %s84 = sphi 0, %s70
      %s90 = sphi 0, %s92
      %s93 = sphi 0, %s90
      %s94 = sphi 0, %s93
      %s110 = sphi 0, %s94
    $region4: #{tpu_custom_call.1} parent=1 // loop_header_branch
      %15 = sbr.rel (%p13) target = $region8
    $region5: #{tpu_custom_call.1} parent=1 // loop_body
      %s17 = ssub.s32 %s12, 1
      %s18 = ssub.s32 %s12, 2
      %s19 = sadd.s32 %s12, 1
      %s20 = ssub.s32 %s12, %s19
      %p21 = scmp.eq.s32.totalorder %s20, 0
      %s23 = sadd.s32 %s22, 1
      %s24 = scalar_select %p21, %s22, %s23
      %p27 = pneg %p21
      %p28 = scmp.eq.s32.totalorder %s12, 1
      %p29 = por %p27, %p28
      %p30 = scmp.ne.s32.totalorder %s22, %s25
      %p31 = scmp.eq.s32.totalorder %s12, 0
      %p32 = por %p30, %p31
      %p33 = scmp.ne.s32.totalorder %s22, %s25
      %p34 = scmp.eq.s32.totalorder %s17, 1
      %p35 = por %p33, %p34
      %p36 = scmp.ne.s32.totalorder %s25, %s26
      %p37 = scmp.eq.s32.totalorder %s17, 0
      %p38 = por %p36, %p37
      %p39 = scmp.ne.s32.totalorder %s25, %s26
      %p40 = scmp.eq.s32.totalorder %s18, 1
      %p41 = por %p39, %p40
      %p43 = scmp.ne.s32.totalorder %s26, %s42
      %p44 = scmp.eq.s32.totalorder %s18, 0
      %p45 = por %p43, %p44
      %s47 = sadd.s32 %s46, 1
      %p50 = scmp.eq.s32.totalorder %s12, 1
      %p51 = scmp.ne.s32.totalorder %s46, %s48
      %p52 = scmp.eq.s32.totalorder %s12, 0
      %p53 = por %p51, %p52
      %p54 = scmp.ne.s32.totalorder %s46, %s48
      %p55 = scmp.eq.s32.totalorder %s17, 1
      %p56 = por %p54, %p55
      %p57 = scmp.ne.s32.totalorder %s48, %s49
      %p58 = scmp.eq.s32.totalorder %s17, 0
      %p59 = por %p57, %p58
      %p60 = scmp.ne.s32.totalorder %s48, %s49
      %p61 = scmp.eq.s32.totalorder %s18, 1
      %p62 = por %p60, %p61
      %p64 = scmp.ne.s32.totalorder %s49, %s63
      %p65 = scmp.eq.s32.totalorder %s18, 0
      %p66 = por %p64, %p65
      %s68 = sadd.s32 %s67, 1
      %p71 = scmp.eq.s32.totalorder %s12, 1
      %p72 = scmp.ne.s32.totalorder %s67, %s69
      %p73 = scmp.eq.s32.totalorder %s12, 0
      %p74 = por %p72, %p73
      %p75 = scmp.ne.s32.totalorder %s67, %s69
      %p76 = scmp.eq.s32.totalorder %s17, 1
      %p77 = por %p75, %p76
      %p78 = scmp.ne.s32.totalorder %s69, %s70
      %p79 = scmp.eq.s32.totalorder %s17, 0
      %p80 = por %p78, %p79
      %p81 = scmp.ne.s32.totalorder %s69, %s70
      %p82 = scmp.eq.s32.totalorder %s18, 1
      %p83 = por %p81, %p82
      %p85 = scmp.ne.s32.totalorder %s70, %s84
      %p86 = scmp.eq.s32.totalorder %s18, 0
      %p87 = por %p85, %p86
      %s88 = ssub.s32 %s12, %s19
      %p89 = scmp.eq.s32.totalorder %s88, 0
      %s91 = sadd.s32 %s90, 1
      %s92 = scalar_select %p89, %s90, %s91
      %p95 = pneg %p89
      %p96 = scmp.eq.s32.totalorder %s12, 1
      %p97 = por %p95, %p96
      %p98 = scmp.ne.s32.totalorder %s90, %s93
      %p99 = scmp.eq.s32.totalorder %s12, 0
      %p100 = por %p98, %p99
      %p101 = scmp.ne.s32.totalorder %s90, %s93
      %p102 = scmp.eq.s32.totalorder %s17, 1
      %p103 = por %p101, %p102
      %p104 = scmp.ne.s32.totalorder %s93, %s94
      %p105 = scmp.eq.s32.totalorder %s17, 0
      %p106 = por %p104, %p105
      %p107 = scmp.ne.s32.totalorder %s93, %s94
      %p108 = scmp.eq.s32.totalorder %s18, 1
      %p109 = por %p107, %p108
      %p111 = scmp.ne.s32.totalorder %s94, %s110
      %p112 = scmp.eq.s32.totalorder %s18, 0
      %p113 = por %p111, %p112
      %p114 = scmp.le.s32.totalorder 1, %s12
      %p115 = scmp.lt.s32.totalorder %s12, 3
      %p116 = pnand %p114, %p115
      %p117 = pneg %p116
      // Predicated region
      $region9: #{tpu_custom_call.1} parent=5 // pred_check
        _
      $region10: #{tpu_custom_call.1} parent=5 // pred_check_branch
        %119 = sbr.rel (%p116) target = $region12
      $region11: #{tpu_custom_call.1} parent=5 // pred_region
        %s120 = ssub.s32 %s12, 1
        // Predicated region
        $region13: #{tpu_custom_call.1} parent=11 // pred_check
          %p121 = pneg %p59
        $region14: #{tpu_custom_call.1} parent=11 // pred_check_branch
          %123 = sbr.rel (%p121) target = $region16
        $region15: #{tpu_custom_call.1} parent=11 // pred_region
          _
        $region16: #{tpu_custom_call.1} parent=11 // pred_fallthru
          _
        // Predicated region
        $region17: #{tpu_custom_call.1} parent=11 // pred_check
          %p124 = pneg %p80
        $region18: #{tpu_custom_call.1} parent=11 // pred_check_branch
          %126 = sbr.rel (%p124) target = $region20
        $region19: #{tpu_custom_call.1} parent=11 // pred_region
          _
        $region20: #{tpu_custom_call.1} parent=11 // pred_fallthru
          _
      $region12: #{tpu_custom_call.1} parent=5 // pred_fallthru
        _
      %p127 = scmp.lt.s32.totalorder %s12, 2
      // Predicated region
      $region21: #{tpu_custom_call.1} parent=5 // pred_check
        %p128 = pneg %p127
      $region22: #{tpu_custom_call.1} parent=5 // pred_check_branch
        %130 = sbr.rel (%p128) target = $region24
      $region23: #{tpu_custom_call.1} parent=5 // pred_region
        // Predicated region
        $region25: #{tpu_custom_call.1} parent=23 // pred_check
          %p131 = pneg %p32
        $region26: #{tpu_custom_call.1} parent=23 // pred_check_branch
          %133 = sbr.rel (%p131) target = $region28
        $region27: #{tpu_custom_call.1} parent=23 // pred_region
          %s134 = smul.u32 32, %s12
          %s135 = ssub.s32 63, %s134
          %p136 = scmp.lt.s32.totalorder %s135, 32
          %s137 = scalar_select %p136, %s135, 32
          %s138 = smul.u32 64, %s137
          %p139 = scmp.lt.s32.totalorder %s134, 62
          %s140 = scalar_select %p139, %s134, 62
          %s141 = smul.addr %s140, 4
          %s142 = scalar_lea.vmem %s0, %s141
          %s143 = smul.u32 32, %s12
          %s144 = ssub.s32 63, %s143
          %p145 = scmp.lt.s32.totalorder %s144, 32
          %s146 = scalar_select %p145, %s144, 32
          %s147 = smul.u32 64, %s146
        $region28: #{tpu_custom_call.1} parent=23 // pred_fallthru
          _
      $region24: #{tpu_custom_call.1} parent=5 // pred_fallthru
        _
      %p148 = scmp.le.s32.totalorder 1, %s12
      %p149 = scmp.lt.s32.totalorder %s12, 3
      %p150 = pnand %p148, %p149
      %p151 = pneg %p150
      // Predicated region
      $region29: #{tpu_custom_call.1} parent=5 // pred_check
        _
      $region30: #{tpu_custom_call.1} parent=5 // pred_check_branch
        %153 = sbr.rel (%p150) target = $region32
      $region31: #{tpu_custom_call.1} parent=5 // pred_region
        %s154 = ssub.s32 %s12, 1
        %s155 = smul.u32 32, %s17
        %s156 = ssub.s32 63, %s155
        %p157 = scmp.lt.s32.totalorder %s156, 32
        %s158 = scalar_select %p157, %s156, 32
        %s159 = smul.u32 64, %s158
        %p160 = scmp.lt.s32.totalorder %s155, 62
        %s161 = scalar_select %p160, %s155, 62
        %s162 = smul.addr %s161, 4
        %s163 = scalar_lea.vmem %s0, %s162
        %p164 = pneg %p38
        %p165 = pneg %p35
        %p166 = pneg %p59
        %p167 = pneg %p56
        %p168 = pneg %p80
        %p169 = pneg %p77
        %p170 = pneg %p106
        %p171 = pneg %p103
        %s172 = sand.u32 %s93, 1
        %s173 = scalar_lea.sflag [#allocation3], %s172
        %s174 = sand.u32 %s93, 1
        %s175 = smul.addr %s174, 128
        %s176 = scalar_lea.vmem [#allocation2], %s175
        %s177 = smul.u32 32, %s17
        %s178 = ssub.s32 63, %s177
        %p179 = scmp.lt.s32.totalorder %s178, 32
        %s180 = scalar_select %p179, %s178, 32
        %s181 = smul.u32 64, %s180
        %p182 = scmp.lt.s32.totalorder %s177, 62
        %s183 = scalar_select %p182, %s177, 62
        %s184 = smul.addr %s183, 4
        %s185 = scalar_lea.vmem %s0, %s184
        %s186 = smul.u32 32, %s17
        %s187 = ssub.s32 63, %s186
        %p188 = scmp.lt.s32.totalorder %s187, 32
        %s189 = scalar_select %p188, %s187, 32
        %s190 = smul.u32 64, %s189
        %s191 = smul.u32 32, %s17
        %s192 = ssub.s32 63, %s191
        %p193 = scmp.lt.s32.totalorder %s192, 32
        %s194 = scalar_select %p193, %s192, 32
        %s195 = smul.u32 64, %s194
        %v197 = vld [vmem:[%s185] sm:$0xf]
        %v198 = vld [vmem:[%s185 + $0x4] sm:$0xf]
        %v199 = vld [vmem:[%s185 + $0x8] sm:$0xf]
        %v200 = vld [vmem:[%s185 + $0xc] sm:$0xf]
        %v201 = vld [vmem:[%s185 + $0x10] sm:$0xf]
        %v202 = vld [vmem:[%s185 + $0x14] sm:$0xf]
        %v203 = vld [vmem:[%s185 + $0x18] sm:$0xf]
        %v204 = vld [vmem:[%s185 + $0x1c] sm:$0xf]
        %v205 = vld [vmem:[%s185 + $0x20] sm:$0xf]
        %v206 = vld [vmem:[%s185 + $0x24] sm:$0xf]
        %v207 = vld [vmem:[%s185 + $0x28] sm:$0xf]
        %v208 = vld [vmem:[%s185 + $0x2c] sm:$0xf]
        %v209 = vld [vmem:[%s185 + $0x30] sm:$0xf]
        %v210 = vld [vmem:[%s185 + $0x34] sm:$0xf]
        %v211 = vld [vmem:[%s185 + $0x38] sm:$0xf]
        %v212 = vld [vmem:[%s185 + $0x3c] sm:$0xf]
        %v213 = vld [vmem:[%s185 + $0x40] sm:$0xf]
        %v214 = vld [vmem:[%s185 + $0x44] sm:$0xf]
        %v215 = vld [vmem:[%s185 + $0x48] sm:$0xf]
        %v216 = vld [vmem:[%s185 + $0x4c] sm:$0xf]
        %v217 = vld [vmem:[%s185 + $0x50] sm:$0xf]
        %v218 = vld [vmem:[%s185 + $0x54] sm:$0xf]
        %v219 = vld [vmem:[%s185 + $0x58] sm:$0xf]
        %v220 = vld [vmem:[%s185 + $0x5c] sm:$0xf]
        %v221 = vld [vmem:[%s185 + $0x60] sm:$0xf]
        %v222 = vld [vmem:[%s185 + $0x64] sm:$0xf]
        %v223 = vld [vmem:[%s185 + $0x68] sm:$0xf]
        %v224 = vld [vmem:[%s185 + $0x6c] sm:$0xf]
        %v225 = vld [vmem:[%s185 + $0x70] sm:$0xf]
        %v226 = vld [vmem:[%s185 + $0x74] sm:$0xf]
        %v227 = vld [vmem:[%s185 + $0x78] sm:$0xf]
        %v228 = vld [vmem:[%s185 + $0x7c] sm:$0xf]
        %v229 = vld [vmem:[%s1] sm:$0xff]
        %v230 = vld [vmem:[%s1 + $0x8] sm:$0xff]
        %v231 = vld [vmem:[%s1 + $0x10] sm:$0xff]
        %v232 = vld [vmem:[%s1 + $0x18] sm:$0x33]
        %v265 = vunpack.c.l.b16 %v197
        %v266 = vunpack.c.l.b16 %v198
        %v267 = vunpack.c.l.b16 %v199
        %v268 = vunpack.c.l.b16 %v200
        %v269 = vunpack.c.l.b16 %v201
        %v270 = vunpack.c.l.b16 %v202
        %v271 = vunpack.c.l.b16 %v203
        %v272 = vunpack.c.l.b16 %v204
        %v273 = vunpack.c.l.b16 %v205
        %v274 = vunpack.c.l.b16 %v206
        %v275 = vunpack.c.l.b16 %v207
        %v276 = vunpack.c.l.b16 %v208
        %v277 = vunpack.c.l.b16 %v209
        %v278 = vunpack.c.l.b16 %v210
        %v279 = vunpack.c.l.b16 %v211
        %v280 = vunpack.c.l.b16 %v212
        %v281 = vunpack.c.l.b16 %v213
        %v282 = vunpack.c.l.b16 %v214
        %v283 = vunpack.c.l.b16 %v215
        %v284 = vunpack.c.l.b16 %v216
        %v285 = vunpack.c.l.b16 %v217
        %v286 = vunpack.c.l.b16 %v218
        %v287 = vunpack.c.l.b16 %v219
        %v288 = vunpack.c.l.b16 %v220
        %v289 = vunpack.c.l.b16 %v221
        %v290 = vunpack.c.l.b16 %v222
        %v291 = vunpack.c.l.b16 %v223
        %v292 = vunpack.c.l.b16 %v224
        %v293 = vunpack.c.l.b16 %v225
        %v294 = vunpack.c.l.b16 %v226
        %v295 = vunpack.c.l.b16 %v227
        %v296 = vunpack.c.l.b16 %v228
        %v297 = vpack.c.b16 %v266, %v265
        %v298 = vpack.c.b16 %v268, %v267
        %v299 = vpack.c.b16 %v270, %v269
        %v300 = vpack.c.b16 %v272, %v271
        %v301 = vpack.c.b16 %v274, %v273
        %v302 = vpack.c.b16 %v276, %v275
        %v303 = vpack.c.b16 %v278, %v277
        %v304 = vpack.c.b16 %v280, %v279
        %v305 = vpack.c.b16 %v282, %v281
        %v306 = vpack.c.b16 %v284, %v283
        %v307 = vpack.c.b16 %v286, %v285
        %v308 = vpack.c.b16 %v288, %v287
        %v309 = vpack.c.b16 %v290, %v289
        %v310 = vpack.c.b16 %v292, %v291
        %v311 = vpack.c.b16 %v294, %v293
        %v312 = vpack.c.b16 %v296, %v295
        %v317 = vunpack.c.l.b16 %v229
        %v318 = vunpack.c.h.b16 %v229
        %v319 = vunpack.c.l.b16 %v230
        %v320 = vunpack.c.h.b16 %v230
        %v321 = vunpack.c.l.b16 %v231
        %v322 = vunpack.c.h.b16 %v231
        %v323 = vunpack.c.l.b16 %v232
        %v324 = vunpack.c.h.b16 %v232
        %v325 = vpack.c.b16 %v319, %v317
        %v326 = vpack.c.b16 %v320, %v318
        %v327 = vpack.c.b16 %v323, %v321
        %v328 = vpack.c.b16 %v324, %v322
        %vm331 = vcmask 228352
        %v333 = vsel %vm331, %v297, 0
        %v336 = vsel %vm331, %v298, 0
        %v339 = vsel %vm331, %v299, 0
        %v342 = vsel %vm331, %v300, 0
        %v345 = vsel %vm331, %v301, 0
        %v348 = vsel %vm331, %v302, 0
        %v351 = vsel %vm331, %v303, 0
        %v354 = vsel %vm331, %v304, 0
        %v357 = vsel %vm331, %v305, 0
        %v360 = vsel %vm331, %v306, 0
        %v363 = vsel %vm331, %v307, 0
        %v366 = vsel %vm331, %v308, 0
        %v369 = vsel %vm331, %v309, 0
        %v372 = vsel %vm331, %v310, 0
        %v375 = vsel %vm331, %v311, 0
        %v378 = vsel %vm331, %v312, 0
        %vm380 = vcmask 1045504
        %v382 = vsel %vm380, %v327, 0
        %v385 = vsel %vm380, %v328, 0
        %387 = vmatprep.subr.bf16.mxu0 %v326
        %388 = vmatpush1.bf16.msra.mxu0 %v325
        %389 = vmatprep.subr.bf16.mxu0 %v385
        %390 = vmatpush1.bf16.msra.mxu0 %v382
        %391 = vmatprep.subr.bf16.mxu0 0
        %392 = vmatpush1.bf16.msra.mxu0 0
        %393 = vmatprep.subr.bf16.mxu0 0
        %394 = vmatpush1.bf16.msra.mxu0 0
        %395 = vmatprep.subr.bf16.mxu0 0
        %396 = vmatpush1.bf16.msra.mxu0 0
        %397 = vmatprep.subr.bf16.mxu0 0
        %398 = vmatpush1.bf16.msra.mxu0 0
        %399 = vmatprep.subr.bf16.mxu0 0
        %400 = vmatpush1.bf16.msra.mxu0 0
        %401 = vmatprep.subr.bf16.mxu0 0
        %402 = vmatpush1.bf16.msra.mxu0 0
        %403 = vmatprep.subr.bf16.mxu0 0
        %404 = vmatpush1.bf16.msra.mxu0 0
        %405 = vmatprep.subr.bf16.mxu0 0
        %406 = vmatpush1.bf16.msra.mxu0 0
        %407 = vmatprep.subr.bf16.mxu0 0
        %408 = vmatpush1.bf16.msra.mxu0 0
        %409 = vmatprep.subr.bf16.mxu0 0
        %410 = vmatpush1.bf16.msra.mxu0 0
        %411 = vmatprep.subr.bf16.mxu0 0
        %412 = vmatpush1.bf16.msra.mxu0 0
        %413 = vmatprep.subr.bf16.mxu0 0
        %414 = vmatpush1.bf16.msra.mxu0 0
        %415 = vmatprep.subr.bf16.mxu0 0
        %416 = vmatpush1.bf16.msra.mxu0 0
        %417 = vmatprep.subr.bf16.mxu0 0
        %418 = vmatpush1.bf16.msra.mxu0 0
        %419 = vmatprep.mubr.bf16.mxu0 0
        %420 = vmatmul.mubr.bf16.gmra.mrb[0].mxu0 %v333
        %v421 = vpop.f32.mrb[0].mxu0
        %v422 = vadd.f32 0.0, %v421
        %v423 = vpop.f32.mrb[0].mxu0
        %v424 = vadd.f32 0.0, %v423
        %v425 = vpop.f32.mrb[0].mxu0
        %v426 = vadd.f32 0.0, %v425
        %v427 = vpop.f32.mrb[0].mxu0
        %v428 = vadd.f32 0.0, %v427
        %429 = vmatprep.mubr.bf16.mxu0 0
        %430 = vmatmul.mubr.bf16.gmra.mrb[0].mxu0 %v336
        %v431 = vpop.f32.mrb[0].mxu0
        %v432 = vadd.f32 0.0, %v431
        %v433 = vpop.f32.mrb[0].mxu0
        %v434 = vadd.f32 0.0, %v433
        %v435 = vpop.f32.mrb[0].mxu0
        %v436 = vadd.f32 0.0, %v435
        %v437 = vpop.f32.mrb[0].mxu0
        %v438 = vadd.f32 0.0, %v437
        %439 = vmatprep.mubr.bf16.mxu0 0
        %440 = vmatmul.mubr.bf16.gmra.mrb[0].mxu0 %v339
        %v441 = vpop.f32.mrb[0].mxu0
        %v442 = vadd.f32 0.0, %v441
        %v443 = vpop.f32.mrb[0].mxu0
        %v444 = vadd.f32 0.0, %v443
        %v445 = vpop.f32.mrb[0].mxu0
        %v446 = vadd.f32 0.0, %v445
        %v447 = vpop.f32.mrb[0].mxu0
        %v448 = vadd.f32 0.0, %v447
        %449 = vmatprep.mubr.bf16.mxu0 0
        %450 = vmatmul.mubr.bf16.gmra.mrb[0].mxu0 %v342
        %v451 = vpop.f32.mrb[0].mxu0
        %v452 = vadd.f32 0.0, %v451
        %v453 = vpop.f32.mrb[0].mxu0
        %v454 = vadd.f32 0.0, %v453
        %v455 = vpop.f32.mrb[0].mxu0
        %v456 = vadd.f32 0.0, %v455
        %v457 = vpop.f32.mrb[0].mxu0
        %v458 = vadd.f32 0.0, %v457
        %459 = vmatprep.mubr.bf16.mxu0 0
        %460 = vmatmul.mubr.bf16.gmra.mrb[0].mxu0 %v345
        %v461 = vpop.f32.mrb[0].mxu0
        %v462 = vadd.f32 0.0, %v461
        %v463 = vpop.f32.mrb[0].mxu0
        %v464 = vadd.f32 0.0, %v463
        %v465 = vpop.f32.mrb[0].mxu0
        %v466 = vadd.f32 0.0, %v465
        %v467 = vpop.f32.mrb[0].mxu0
        %v468 = vadd.f32 0.0, %v467
        %469 = vmatprep.mubr.bf16.mxu0 0
        %470 = vmatmul.mubr.bf16.gmra.mrb[0].mxu0 %v348
        %v471 = vpop.f32.mrb[0].mxu0
        %v472 = vadd.f32 0.0, %v471
        %v473 = vpop.f32.mrb[0].mxu0
        %v474 = vadd.f32 0.0, %v473
        %v475 = vpop.f32.mrb[0].mxu0
        %v476 = vadd.f32 0.0, %v475
        %v477 = vpop.f32.mrb[0].mxu0
        %v478 = vadd.f32 0.0, %v477
        %479 = vmatprep.mubr.bf16.mxu0 0
        %480 = vmatmul.mubr.bf16.gmra.mrb[0].mxu0 %v351
        %v481 = vpop.f32.mrb[0].mxu0
        %v482 = vadd.f32 0.0, %v481
        %v483 = vpop.f32.mrb[0].mxu0
        %v484 = vadd.f32 0.0, %v483
        %v485 = vpop.f32.mrb[0].mxu0
        %v486 = vadd.f32 0.0, %v485
        %v487 = vpop.f32.mrb[0].mxu0
        %v488 = vadd.f32 0.0, %v487
        %489 = vmatprep.mubr.bf16.mxu0 0
        %490 = vmatmul.mubr.bf16.gmra.mrb[0].mxu0 %v354
        %v491 = vpop.f32.mrb[0].mxu0
        %v492 = vadd.f32 0.0, %v491
        %v493 = vpop.f32.mrb[0].mxu0
        %v494 = vadd.f32 0.0, %v493
        %v495 = vpop.f32.mrb[0].mxu0
        %v496 = vadd.f32 0.0, %v495
        %v497 = vpop.f32.mrb[0].mxu0
        %v498 = vadd.f32 0.0, %v497
        %499 = vmatprep.mubr.bf16.mxu0 0
        %500 = vmatmul.mubr.bf16.gmra.mrb[0].mxu0 %v357
        %v501 = vpop.f32.mrb[0].mxu0
        %v502 = vadd.f32 0.0, %v501
        %v503 = vpop.f32.mrb[0].mxu0
        %v504 = vadd.f32 0.0, %v503
        %v505 = vpop.f32.mrb[0].mxu0
        %v506 = vadd.f32 0.0, %v505
        %v507 = vpop.f32.mrb[0].mxu0
        %v508 = vadd.f32 0.0, %v507
        %509 = vmatprep.mubr.bf16.mxu0 0
        %510 = vmatmul.mubr.bf16.gmra.mrb[0].mxu0 %v360
        %v511 = vpop.f32.mrb[0].mxu0
        %v512 = vadd.f32 0.0, %v511
        %v513 = vpop.f32.mrb[0].mxu0
        %v514 = vadd.f32 0.0, %v513
        %v515 = vpop.f32.mrb[0].mxu0
        %v516 = vadd.f32 0.0, %v515
        %v517 = vpop.f32.mrb[0].mxu0
        %v518 = vadd.f32 0.0, %v517
        %519 = vmatprep.mubr.bf16.mxu0 0
        %520 = vmatmul.mubr.bf16.gmra.mrb[0].mxu0 %v363
        %v521 = vpop.f32.mrb[0].mxu0
        %v522 = vadd.f32 0.0, %v521
        %v523 = vpop.f32.mrb[0].mxu0
        %v524 = vadd.f32 0.0, %v523
        %v525 = vpop.f32.mrb[0].mxu0
        %v526 = vadd.f32 0.0, %v525
        %v527 = vpop.f32.mrb[0].mxu0
        %v528 = vadd.f32 0.0, %v527
        %529 = vmatprep.mubr.bf16.mxu0 0
        %530 = vmatmul.mubr.bf16.gmra.mrb[0].mxu0 %v366
        %v531 = vpop.f32.mrb[0].mxu0
        %v532 = vadd.f32 0.0, %v531
        %v533 = vpop.f32.mrb[0].mxu0
        %v534 = vadd.f32 0.0, %v533
        %v535 = vpop.f32.mrb[0].mxu0
        %v536 = vadd.f32 0.0, %v535
        %v537 = vpop.f32.mrb[0].mxu0
        %v538 = vadd.f32 0.0, %v537
        %539 = vmatprep.mubr.bf16.mxu0 0
        %540 = vmatmul.mubr.bf16.gmra.mrb[0].mxu0 %v369
        %v541 = vpop.f32.mrb[0].mxu0
        %v542 = vadd.f32 0.0, %v541
        %v543 = vpop.f32.mrb[0].mxu0
        %v544 = vadd.f32 0.0, %v543
        %v545 = vpop.f32.mrb[0].mxu0
        %v546 = vadd.f32 0.0, %v545
        %v547 = vpop.f32.mrb[0].mxu0
        %v548 = vadd.f32 0.0, %v547
        %549 = vmatprep.mubr.bf16.mxu0 0
        %550 = vmatmul.mubr.bf16.gmra.mrb[0].mxu0 %v372
        %v551 = vpop.f32.mrb[0].mxu0
        %v552 = vadd.f32 0.0, %v551
        %v553 = vpop.f32.mrb[0].mxu0
        %v554 = vadd.f32 0.0, %v553
        %v555 = vpop.f32.mrb[0].mxu0
        %v556 = vadd.f32 0.0, %v555
        %v557 = vpop.f32.mrb[0].mxu0
        %v558 = vadd.f32 0.0, %v557
        %559 = vmatprep.mubr.bf16.mxu0 0
        %560 = vmatmul.mubr.bf16.gmra.mrb[0].mxu0 %v375
        %v561 = vpop.f32.mrb[0].mxu0
        %v562 = vadd.f32 0.0, %v561
        %v563 = vpop.f32.mrb[0].mxu0
        %v564 = vadd.f32 0.0, %v563
        %v565 = vpop.f32.mrb[0].mxu0
        %v566 = vadd.f32 0.0, %v565
        %v567 = vpop.f32.mrb[0].mxu0
        %v568 = vadd.f32 0.0, %v567
        %569 = vmatprep.mubr.bf16.mxu0 0
        %570 = vmatmul.mubr.bf16.gmra.mrb[0].mxu0 %v378
        %v571 = vpop.f32.mrb[0].mxu0
        %v572 = vadd.f32 0.0, %v571
        %v573 = vpop.f32.mrb[0].mxu0
        %v574 = vadd.f32 0.0, %v573
        %v575 = vpop.f32.mrb[0].mxu0
        %v576 = vadd.f32 0.0, %v575
        %v577 = vpop.f32.mrb[0].mxu0
        %v578 = vadd.f32 0.0, %v577
        %579 = vdwg.mxu0
        %v580 = vmul.f32 %v422, %v424
        %v581 = vmul.f32 %v426, %v428
        %v582 = vmul.f32 %v432, %v434
        %v583 = vmul.f32 %v436, %v438
        %v584 = vmul.f32 %v442, %v444
        %v585 = vmul.f32 %v446, %v448
        %v586 = vmul.f32 %v452, %v454
        %v587 = vmul.f32 %v456, %v458
        %v588 = vmul.f32 %v462, %v464
        %v589 = vmul.f32 %v466, %v468
        %v590 = vmul.f32 %v472, %v474
        %v591 = vmul.f32 %v476, %v478
        %v592 = vmul.f32 %v482, %v484
        %v593 = vmul.f32 %v486, %v488
        %v594 = vmul.f32 %v492, %v494
        %v595 = vmul.f32 %v496, %v498
        %v596 = vmul.f32 %v502, %v504
        %v597 = vmul.f32 %v506, %v508
        %v598 = vmul.f32 %v512, %v514
        %v599 = vmul.f32 %v516, %v518
        %v600 = vmul.f32 %v522, %v524
        %v601 = vmul.f32 %v526, %v528
        %v602 = vmul.f32 %v532, %v534
        %v603 = vmul.f32 %v536, %v538
        %v604 = vmul.f32 %v542, %v544
        %v605 = vmul.f32 %v546, %v548
        %v606 = vmul.f32 %v552, %v554
        %v607 = vmul.f32 %v556, %v558
        %v608 = vmul.f32 %v562, %v564
        %v609 = vmul.f32 %v566, %v568
        %v610 = vmul.f32 %v572, %v574
        %v611 = vmul.f32 %v576, %v578
        %v612 = vpack.c.bf16 %v581, %v580
        %v613 = vpack.c.bf16 %v583, %v582
        %v614 = vpack.c.bf16 %v585, %v584
        %v615 = vpack.c.bf16 %v587, %v586
        %v616 = vpack.c.bf16 %v589, %v588
        %v617 = vpack.c.bf16 %v591, %v590
        %v618 = vpack.c.bf16 %v593, %v592
        %v619 = vpack.c.bf16 %v595, %v594
        %v620 = vpack.c.bf16 %v597, %v596
        %v621 = vpack.c.bf16 %v599, %v598
        %v622 = vpack.c.bf16 %v601, %v600
        %v623 = vpack.c.bf16 %v603, %v602
        %v624 = vpack.c.bf16 %v605, %v604
        %v625 = vpack.c.bf16 %v607, %v606
        %v626 = vpack.c.bf16 %v609, %v608
        %v627 = vpack.c.bf16 %v611, %v610
        %v628 = vld [vmem:[%s2] sm:$0xf]
        %v629 = vld [vmem:[%s2 + $0x4] sm:$0xf]
        %v630 = vld [vmem:[%s2 + $0x8] sm:$0xf]
        %v631 = vld [vmem:[%s2 + $0xc] sm:$0xf]
        %v632 = vld [vmem:[%s2 + $0x10] sm:$0xf]
        %v633 = vld [vmem:[%s2 + $0x14] sm:$0xf]
        %v634 = vld [vmem:[%s2 + $0x18] sm:$0xf]
        %v635 = vld [vmem:[%s2 + $0x1c] sm:$0xf]
        %v636 = vld [vmem:[%s2 + $0x20] sm:$0xf]
        %v637 = vld [vmem:[%s2 + $0x24] sm:$0xf]
        %v638 = vld [vmem:[%s2 + $0x28] sm:$0xf]
        %v639 = vld [vmem:[%s2 + $0x2c] sm:$0xf]
        %v640 = vld [vmem:[%s2 + $0x30] sm:$0xf]
        %v641 = vld [vmem:[%s2 + $0x34] sm:$0xf]
        %v642 = vld [vmem:[%s2 + $0x38] sm:$0xf]
        %v643 = vld [vmem:[%s2 + $0x3c] sm:$0xf]
        %v660 = vunpack.c.l.b16 %v628
        %v661 = vunpack.c.l.b16 %v629
        %v662 = vunpack.c.l.b16 %v630
        %v663 = vunpack.c.l.b16 %v631
        %v664 = vunpack.c.l.b16 %v632
        %v665 = vunpack.c.l.b16 %v633
        %v666 = vunpack.c.l.b16 %v634
        %v667 = vunpack.c.l.b16 %v635
        %v668 = vunpack.c.l.b16 %v636
        %v669 = vunpack.c.l.b16 %v637
        %v670 = vunpack.c.l.b16 %v638
        %v671 = vunpack.c.l.b16 %v639
        %v672 = vunpack.c.l.b16 %v640
        %v673 = vunpack.c.l.b16 %v641
        %v674 = vunpack.c.l.b16 %v642
        %v675 = vunpack.c.l.b16 %v643
        %v676 = vpack.c.b16 %v661, %v660
        %v677 = vpack.c.b16 %v663, %v662
        %v678 = vpack.c.b16 %v665, %v664
        %v679 = vpack.c.b16 %v667, %v666
        %v680 = vpack.c.b16 %v669, %v668
        %v681 = vpack.c.b16 %v671, %v670
        %v682 = vpack.c.b16 %v673, %v672
        %v683 = vpack.c.b16 %v675, %v674
        %692 = vmatprep.subr.bf16.mxu0 0
        %693 = vmatpush1.bf16.msra.mxu0 %v676
        %694 = vmatprep.subr.bf16.mxu0 0
        %695 = vmatpush1.bf16.msra.mxu0 %v677
        %696 = vmatprep.subr.bf16.mxu0 0
        %697 = vmatpush1.bf16.msra.mxu0 %v678
        %698 = vmatprep.subr.bf16.mxu0 0
        %699 = vmatpush1.bf16.msra.mxu0 %v679
        %700 = vmatprep.subr.bf16.mxu0 0
        %701 = vmatpush1.bf16.msra.mxu0 %v680
        %702 = vmatprep.subr.bf16.mxu0 0
        %703 = vmatpush1.bf16.msra.mxu0 %v681
        %704 = vmatprep.subr.bf16.mxu0 0
        %705 = vmatpush1.bf16.msra.mxu0 %v682
        %706 = vmatprep.subr.bf16.mxu0 0
        %707 = vmatpush1.bf16.msra.mxu0 %v683
        %708 = vmatprep.subr.bf16.mxu0 0
        %709 = vmatpush1.bf16.msra.mxu0 0
        %710 = vmatprep.subr.bf16.mxu0 0
        %711 = vmatpush1.bf16.msra.mxu0 0
        %712 = vmatprep.subr.bf16.mxu0 0
        %713 = vmatpush1.bf16.msra.mxu0 0
        %714 = vmatprep.subr.bf16.mxu0 0
        %715 = vmatpush1.bf16.msra.mxu0 0
        %716 = vmatprep.subr.bf16.mxu0 0
        %717 = vmatpush1.bf16.msra.mxu0 0
        %718 = vmatprep.subr.bf16.mxu0 0
        %719 = vmatpush1.bf16.msra.mxu0 0
        %720 = vmatprep.subr.bf16.mxu0 0
        %721 = vmatpush1.bf16.msra.mxu0 0
        %722 = vmatprep.subr.bf16.mxu0 0
        %723 = vmatpush1.bf16.msra.mxu0 0
        %724 = vmatprep.mubr.bf16.mxu0 0
        %725 = vmatmul.mubr.bf16.gmra.mrb[0].mxu0 %v612
        %v726 = vpop.f32.mrb[0].mxu0
        %v727 = vadd.f32 0.0, %v726
        %v728 = vpop.f32.mrb[0].mxu0
        %v729 = vpop.f32.mrb[0].mxu0
        %v730 = vadd.f32 0.0, %v729
        %v731 = vpop.f32.mrb[0].mxu0
        %732 = vmatprep.mubr.bf16.mxu0 0
        %733 = vmatmul.mubr.bf16.gmra.mrb[0].mxu0 %v613
        %v734 = vpop.f32.mrb[0].mxu0
        %v735 = vadd.f32 0.0, %v734
        %v736 = vpop.f32.mrb[0].mxu0
        %v737 = vpop.f32.mrb[0].mxu0
        %v738 = vadd.f32 0.0, %v737
        %v739 = vpop.f32.mrb[0].mxu0
        %740 = vmatprep.mubr.bf16.mxu0 0
        %741 = vmatmul.mubr.bf16.gmra.mrb[0].mxu0 %v614
        %v742 = vpop.f32.mrb[0].mxu0
        %v743 = vadd.f32 0.0, %v742
        %v744 = vpop.f32.mrb[0].mxu0
        %v745 = vpop.f32.mrb[0].mxu0
        %v746 = vadd.f32 0.0, %v745
        %v747 = vpop.f32.mrb[0].mxu0
        %748 = vmatprep.mubr.bf16.mxu0 0
        %749 = vmatmul.mubr.bf16.gmra.mrb[0].mxu0 %v615
        %v750 = vpop.f32.mrb[0].mxu0
        %v751 = vadd.f32 0.0, %v750
        %v752 = vpop.f32.mrb[0].mxu0
        %v753 = vpop.f32.mrb[0].mxu0
        %v754 = vadd.f32 0.0, %v753
        %v755 = vpop.f32.mrb[0].mxu0
        %756 = vmatprep.mubr.bf16.mxu0 0
        %757 = vmatmul.mubr.bf16.gmra.mrb[0].mxu0 %v616
        %v758 = vpop.f32.mrb[0].mxu0
        %v759 = vadd.f32 0.0, %v758
        %v760 = vpop.f32.mrb[0].mxu0
        %v761 = vpop.f32.mrb[0].mxu0
        %v762 = vadd.f32 0.0, %v761
        %v763 = vpop.f32.mrb[0].mxu0
        %764 = vmatprep.mubr.bf16.mxu0 0
        %765 = vmatmul.mubr.bf16.gmra.mrb[0].mxu0 %v617
        %v766 = vpop.f32.mrb[0].mxu0
        %v767 = vadd.f32 0.0, %v766
        %v768 = vpop.f32.mrb[0].mxu0
        %v769 = vpop.f32.mrb[0].mxu0
        %v770 = vadd.f32 0.0, %v769
        %v771 = vpop.f32.mrb[0].mxu0
        %772 = vmatprep.mubr.bf16.mxu0 0
        %773 = vmatmul.mubr.bf16.gmra.mrb[0].mxu0 %v618
        %v774 = vpop.f32.mrb[0].mxu0
        %v775 = vadd.f32 0.0, %v774
        %v776 = vpop.f32.mrb[0].mxu0
        %v777 = vpop.f32.mrb[0].mxu0
        %v778 = vadd.f32 0.0, %v777
        %v779 = vpop.f32.mrb[0].mxu0
        %780 = vmatprep.mubr.bf16.mxu0 0
        %781 = vmatmul.mubr.bf16.gmra.mrb[0].mxu0 %v619
        %v782 = vpop.f32.mrb[0].mxu0
        %v783 = vadd.f32 0.0, %v782
        %v784 = vpop.f32.mrb[0].mxu0
        %v785 = vpop.f32.mrb[0].mxu0
        %v786 = vadd.f32 0.0, %v785
        %v787 = vpop.f32.mrb[0].mxu0
        %788 = vmatprep.mubr.bf16.mxu0 0
        %789 = vmatmul.mubr.bf16.gmra.mrb[0].mxu0 %v620
        %v790 = vpop.f32.mrb[0].mxu0
        %v791 = vadd.f32 0.0, %v790
        %v792 = vpop.f32.mrb[0].mxu0
        %v793 = vpop.f32.mrb[0].mxu0
        %v794 = vadd.f32 0.0, %v793
        %v795 = vpop.f32.mrb[0].mxu0
        %796 = vmatprep.mubr.bf16.mxu0 0
        %797 = vmatmul.mubr.bf16.gmra.mrb[0].mxu0 %v621
        %v798 = vpop.f32.mrb[0].mxu0
        %v799 = vadd.f32 0.0, %v798
        %v800 = vpop.f32.mrb[0].mxu0
        %v801 = vpop.f32.mrb[0].mxu0
        %v802 = vadd.f32 0.0, %v801
        %v803 = vpop.f32.mrb[0].mxu0
        %804 = vmatprep.mubr.bf16.mxu0 0
        %805 = vmatmul.mubr.bf16.gmra.mrb[0].mxu0 %v622
        %v806 = vpop.f32.mrb[0].mxu0
        %v807 = vadd.f32 0.0, %v806
        %v808 = vpop.f32.mrb[0].mxu0
        %v809 = vpop.f32.mrb[0].mxu0
        %v810 = vadd.f32 0.0, %v809
        %v811 = vpop.f32.mrb[0].mxu0
        %812 = vmatprep.mubr.bf16.mxu0 0
        %813 = vmatmul.mubr.bf16.gmra.mrb[0].mxu0 %v623
        %v814 = vpop.f32.mrb[0].mxu0
        %v815 = vadd.f32 0.0, %v814
        %v816 = vpop.f32.mrb[0].mxu0
        %v817 = vpop.f32.mrb[0].mxu0
        %v818 = vadd.f32 0.0, %v817
        %v819 = vpop.f32.mrb[0].mxu0
        %820 = vmatprep.mubr.bf16.mxu0 0
        %821 = vmatmul.mubr.bf16.gmra.mrb[0].mxu0 %v624
        %v822 = vpop.f32.mrb[0].mxu0
        %v823 = vadd.f32 0.0, %v822
        %v824 = vpop.f32.mrb[0].mxu0
        %v825 = vpop.f32.mrb[0].mxu0
        %v826 = vadd.f32 0.0, %v825
        %v827 = vpop.f32.mrb[0].mxu0
        %828 = vmatprep.mubr.bf16.mxu0 0
        %829 = vmatmul.mubr.bf16.gmra.mrb[0].mxu0 %v625
        %v830 = vpop.f32.mrb[0].mxu0
        %v831 = vadd.f32 0.0, %v830
        %v832 = vpop.f32.mrb[0].mxu0
        %v833 = vpop.f32.mrb[0].mxu0
        %v834 = vadd.f32 0.0, %v833
        %v835 = vpop.f32.mrb[0].mxu0
        %836 = vmatprep.mubr.bf16.mxu0 0
        %837 = vmatmul.mubr.bf16.gmra.mrb[0].mxu0 %v626
        %v838 = vpop.f32.mrb[0].mxu0
        %v839 = vadd.f32 0.0, %v838
        %v840 = vpop.f32.mrb[0].mxu0
        %v841 = vpop.f32.mrb[0].mxu0
        %v842 = vadd.f32 0.0, %v841
        %v843 = vpop.f32.mrb[0].mxu0
        %844 = vmatprep.mubr.bf16.mxu0 0
        %845 = vmatmul.mubr.bf16.gmra.mrb[0].mxu0 %v627
        %v846 = vpop.f32.mrb[0].mxu0
        %v847 = vadd.f32 0.0, %v846
        %v848 = vpop.f32.mrb[0].mxu0
        %v849 = vpop.f32.mrb[0].mxu0
        %v850 = vadd.f32 0.0, %v849
        %v851 = vpop.f32.mrb[0].mxu0
        %852 = vdwg.mxu0
        %v853 = vpack.c.bf16 %v730, %v727
        %v854 = vpack.c.bf16 %v738, %v735
        %v855 = vpack.c.bf16 %v746, %v743
        %v856 = vpack.c.bf16 %v754, %v751
        %v857 = vpack.c.bf16 %v762, %v759
        %v858 = vpack.c.bf16 %v770, %v767
        %v859 = vpack.c.bf16 %v778, %v775
        %v860 = vpack.c.bf16 %v786, %v783
        %v861 = vpack.c.bf16 %v794, %v791
        %v862 = vpack.c.bf16 %v802, %v799
        %v863 = vpack.c.bf16 %v810, %v807
        %v864 = vpack.c.bf16 %v818, %v815
        %v865 = vpack.c.bf16 %v826, %v823
        %v866 = vpack.c.bf16 %v834, %v831
        %v867 = vpack.c.bf16 %v842, %v839
        %v868 = vpack.c.bf16 %v850, %v847
        %v885 = vunpack.c.l.b16 %v853
        %v886 = vunpack.c.h.b16 %v853
        %v887 = vunpack.c.l.b16 %v854
        %v888 = vunpack.c.h.b16 %v854
        %v889 = vunpack.c.l.b16 %v855
        %v890 = vunpack.c.h.b16 %v855
        %v891 = vunpack.c.l.b16 %v856
        %v892 = vunpack.c.h.b16 %v856
        %v893 = vunpack.c.l.b16 %v857
        %v894 = vunpack.c.h.b16 %v857
        %v895 = vunpack.c.l.b16 %v858
        %v896 = vunpack.c.h.b16 %v858
        %v897 = vunpack.c.l.b16 %v859
        %v898 = vunpack.c.h.b16 %v859
        %v899 = vunpack.c.l.b16 %v860
        %v900 = vunpack.c.h.b16 %v860
        %v901 = vunpack.c.l.b16 %v861
        %v902 = vunpack.c.h.b16 %v861
        %v903 = vunpack.c.l.b16 %v862
        %v904 = vunpack.c.h.b16 %v862
        %v905 = vunpack.c.l.b16 %v863
        %v906 = vunpack.c.h.b16 %v863
        %v907 = vunpack.c.l.b16 %v864
        %v908 = vunpack.c.h.b16 %v864
        %v909 = vunpack.c.l.b16 %v865
        %v910 = vunpack.c.h.b16 %v865
        %v911 = vunpack.c.l.b16 %v866
        %v912 = vunpack.c.h.b16 %v866
        %v913 = vunpack.c.l.b16 %v867
        %v914 = vunpack.c.h.b16 %v867
        %v915 = vunpack.c.l.b16 %v868
        %v916 = vunpack.c.h.b16 %v868
        %v917 = vpack.c.b16 %v885, %v885
        %v918 = vpack.c.b16 %v886, %v886
        %v919 = vpack.c.b16 %v887, %v887
        %v920 = vpack.c.b16 %v888, %v888
        %v921 = vpack.c.b16 %v889, %v889
        %v922 = vpack.c.b16 %v890, %v890
        %v923 = vpack.c.b16 %v891, %v891
        %v924 = vpack.c.b16 %v892, %v892
        %v925 = vpack.c.b16 %v893, %v893
        %v926 = vpack.c.b16 %v894, %v894
        %v927 = vpack.c.b16 %v895, %v895
        %v928 = vpack.c.b16 %v896, %v896
        %v929 = vpack.c.b16 %v897, %v897
        %v930 = vpack.c.b16 %v898, %v898
        %v931 = vpack.c.b16 %v899, %v899
        %v932 = vpack.c.b16 %v900, %v900
        %v933 = vpack.c.b16 %v901, %v901
        %v934 = vpack.c.b16 %v902, %v902
        %v935 = vpack.c.b16 %v903, %v903
        %v936 = vpack.c.b16 %v904, %v904
        %v937 = vpack.c.b16 %v905, %v905
        %v938 = vpack.c.b16 %v906, %v906
        %v939 = vpack.c.b16 %v907, %v907
        %v940 = vpack.c.b16 %v908, %v908
        %v941 = vpack.c.b16 %v909, %v909
        %v942 = vpack.c.b16 %v910, %v910
        %v943 = vpack.c.b16 %v911, %v911
        %v944 = vpack.c.b16 %v912, %v912
        %v945 = vpack.c.b16 %v913, %v913
        %v946 = vpack.c.b16 %v914, %v914
        %v947 = vpack.c.b16 %v915, %v915
        %v948 = vpack.c.b16 %v916, %v916
        %981 = vst [vmem:[%s176] sm:$0xf] %v917
        %982 = vst [vmem:[%s176 + $0x4] sm:$0xf] %v918
        %983 = vst [vmem:[%s176 + $0x8] sm:$0xf] %v919
        %984 = vst [vmem:[%s176 + $0xc] sm:$0xf] %v920
        %985 = vst [vmem:[%s176 + $0x10] sm:$0xf] %v921
        %986 = vst [vmem:[%s176 + $0x14] sm:$0xf] %v922
        %987 = vst [vmem:[%s176 + $0x18] sm:$0xf] %v923
        %988 = vst [vmem:[%s176 + $0x1c] sm:$0xf] %v924
        %989 = vst [vmem:[%s176 + $0x20] sm:$0xf] %v925
        %990 = vst [vmem:[%s176 + $0x24] sm:$0xf] %v926
        %991 = vst [vmem:[%s176 + $0x28] sm:$0xf] %v927
        %992 = vst [vmem:[%s176 + $0x2c] sm:$0xf] %v928
        %993 = vst [vmem:[%s176 + $0x30] sm:$0xf] %v929
        %994 = vst [vmem:[%s176 + $0x34] sm:$0xf] %v930
        %995 = vst [vmem:[%s176 + $0x38] sm:$0xf] %v931
        %996 = vst [vmem:[%s176 + $0x3c] sm:$0xf] %v932
        %997 = vst [vmem:[%s176 + $0x40] sm:$0xf] %v933
        %998 = vst [vmem:[%s176 + $0x44] sm:$0xf] %v934
        %999 = vst [vmem:[%s176 + $0x48] sm:$0xf] %v935
        %1000 = vst [vmem:[%s176 + $0x4c] sm:$0xf] %v936
        %1001 = vst [vmem:[%s176 + $0x50] sm:$0xf] %v937
        %1002 = vst [vmem:[%s176 + $0x54] sm:$0xf] %v938
        %1003 = vst [vmem:[%s176 + $0x58] sm:$0xf] %v939
        %1004 = vst [vmem:[%s176 + $0x5c] sm:$0xf] %v940
        %1005 = vst [vmem:[%s176 + $0x60] sm:$0xf] %v941
        %1006 = vst [vmem:[%s176 + $0x64] sm:$0xf] %v942
        %1007 = vst [vmem:[%s176 + $0x68] sm:$0xf] %v943
        %1008 = vst [vmem:[%s176 + $0x6c] sm:$0xf] %v944
        %1009 = vst [vmem:[%s176 + $0x70] sm:$0xf] %v945
        %1010 = vst [vmem:[%s176 + $0x74] sm:$0xf] %v946
        %1011 = vst [vmem:[%s176 + $0x78] sm:$0xf] %v947
        %1012 = vst [vmem:[%s176 + $0x7c] sm:$0xf] %v948
        %s1013 = sand.u32 %s93, 1
        %s1014 = scalar_lea.sflag [#allocation3], %s1013
        %s1015 = sand.u32 %s93, 1
        %s1016 = smul.addr %s1015, 128
        %s1017 = scalar_lea.vmem [#allocation2], %s1016
        // Predicated region
        $region33: #{tpu_custom_call.1} parent=31 // pred_check
          %p1018 = pneg %p103
        $region34: #{tpu_custom_call.1} parent=31 // pred_check_branch
          %1020 = sbr.rel (%p1018) target = $region36
        $region35: #{tpu_custom_call.1} parent=31 // pred_region
          %s1021 = smul.u32 32, %s17
          %s1022 = ssub.s32 63, %s1021
          %p1023 = scmp.lt.s32.totalorder %s1022, 32
          %s1024 = scalar_select %p1023, %s1022, 32
          %s1025 = smul.u32 64, %s1024
          %s1027 = ssub.s32 2048, %s1025
          %1028 = vsyncadd %s1014, %s1027
          %p1029 = scmp.ne.s32.totalorder 0, %s1025
          %s1030 = smul.addr %s1021, 64
          %s1031 = scalar_lea.hbm %s3, %s1030
          %s1032 = smul.u32 4, %s1024
          %s1033 = sshll.u32 %s1017, 4
          %s1034 = int_to_ptr.vmem [resolvable:$true] %s1033
          %s1035 = sshll.u32 %s1032, 4
          %1039 = dma.vmem_to_hbm [thread:$0]  (%p1029), %s1034, %s1035, %s1031, %s1014, 64, 64, 4
        $region36: #{tpu_custom_call.1} parent=31 // pred_fallthru
          _
      $region32: #{tpu_custom_call.1} parent=5 // pred_fallthru
        _
      %p1040 = scmp.le.s32.totalorder 2, %s12
      // Predicated region
      $region37: #{tpu_custom_call.1} parent=5 // pred_check
        %p1041 = pneg %p1040
      $region38: #{tpu_custom_call.1} parent=5 // pred_check_branch
        %1043 = sbr.rel (%p1041) target = $region40
      $region39: #{tpu_custom_call.1} parent=5 // pred_region
        %s1044 = ssub.s32 %s12, 2
        // Predicated region
        $region41: #{tpu_custom_call.1} parent=39 // pred_check
          %p1045 = pneg %p109
        $region42: #{tpu_custom_call.1} parent=39 // pred_check_branch
          %1047 = sbr.rel (%p1045) target = $region44
        $region43: #{tpu_custom_call.1} parent=39 // pred_region
          %s1048 = sand.u32 %s94, 1
          %s1049 = scalar_lea.sflag [#allocation3], %s1048
          %s1050 = sand.u32 %s94, 1
          %s1051 = smul.addr %s1050, 128
          %s1052 = scalar_lea.vmem [#allocation2], %s1051
          %1053 = dma.done %s1049, 2048
        $region44: #{tpu_custom_call.1} parent=39 // pred_fallthru
          _
      $region40: #{tpu_custom_call.1} parent=5 // pred_fallthru
        _
    $region6: #{tpu_custom_call.1} parent=1 // loop_footer
      %s16 = sadd.s32 1, %s12
    $region7: #{tpu_custom_call.1} parent=1 // loop_footer_branch
      %11 = sbr.rel target = $region3
    $region8: #{tpu_custom_call.1} parent=1 // loop_exit
      _
    %1054 = vsyncpa [#allocation3], 1
    %s1055 = scalar_lea.sflag [#allocation3], 1
    %1056 = vsyncpa %s1055, 1

// kernel: tpu_custom_call.1
$region0: #{tpu_custom_call.1}
  #allocation0 [shape = 'u32[]', space=smem, size = 0x4, offset = 0x4, fixed_abs, tag = 'smem constant byte address 0x4 - core index']
  #allocation1 [shape = 'u32[144,128]{1,0:T(1,128)}', space=vmem, size = 0x12000, scoped, tag = 'internal scratch']
  %s0 = inlined_call_operand.vmem [shape: bf16[500,28], index: 0, kind: input, shape index: {}]
  %s1 = inlined_call_operand.vmem [shape: bf16[28,256], index: 1, kind: input, shape index: {}]
  %s2 = inlined_call_operand.vmem [shape: bf16[128,128], index: 2, kind: input, shape index: {}]
  %s3 = inlined_call_operand.hbm [shape: bf16[500,128], index: 3, kind: output, shape index: {}]
  %s4 = sld [smem:[#allocation0]]
  $region45: #{tpu_custom_call.1} parent=0
    _
  %s6 = ssub.s32 1, %s4
  %s7 = scalar_select 0, %s6, %s4
  $region1: #{tpu_custom_call.1} parent=0
    #allocation2 [shape = 'u8[131072]{0}', space=vmem, size = 0x20000, scoped, tag = 'output window, operand 0']
    #allocation3 [shape = 's32[2]{0}', space=sflag, size = 0x8, scoped, tag = 'scoped memory for tpu_custom_call.1']
    %8 = vsyncpa [#allocation3], 0
    %s9 = scalar_lea.sflag [#allocation3], 1
    %10 = vsyncpa %s9, 0
    loop: start=0, step=1, limit=4
    $region2: #{tpu_custom_call.1} parent=1 // loop_pre_header
      _
    $region3: #{tpu_custom_call.1} parent=1 // loop_header
      %s12 = sphi 0, %s16
      %p13 = scmp.ge.s32.totalorder %s12, 4
      %s22 = sphi 0, %s24
      %s25 = sphi 0, %s22
      %s26 = sphi 0, %s25
      %s42 = sphi 0, %s26
      %s46 = sphi 0, %s46
      %s48 = sphi 0, %s46
      %s49 = sphi 0, %s48
      %s63 = sphi 0, %s49
      %s67 = sphi 0, %s67
      %s69 = sphi 0, %s67
      %s70 = sphi 0, %s69
      %s84 = sphi 0, %s70
      %s90 = sphi 0, %s92
      %s93 = sphi 0, %s90
      %s94 = sphi 0, %s93
      %s110 = sphi 0, %s94
    $region4: #{tpu_custom_call.1} parent=1 // loop_header_branch
      %15 = sbr.rel (%p13) target = $region8
    $region5: #{tpu_custom_call.1} parent=1 // loop_body
      %s17 = ssub.s32 %s12, 1
      %s18 = ssub.s32 %s12, 2
      %s19 = sadd.s32 %s12, 1
      %s20 = ssub.s32 %s12, %s19
      %p21 = scmp.eq.s32.totalorder %s20, 0
      %s23 = sadd.s32 %s22, 1
      %s24 = scalar_select %p21, %s22, %s23
      %p27 = pneg %p21
      %p28 = scmp.eq.s32.totalorder %s12, 1
      %p29 = por %p27, %p28
      %p30 = scmp.ne.s32.totalorder %s22, %s25
      %p31 = scmp.eq.s32.totalorder %s12, 0
      %p32 = por %p30, %p31
      %p33 = scmp.ne.s32.totalorder %s22, %s25
      %p34 = scmp.eq.s32.totalorder %s17, 1
      %p35 = por %p33, %p34
      %p36 = scmp.ne.s32.totalorder %s25, %s26
      %p37 = scmp.eq.s32.totalorder %s17, 0
      %p38 = por %p36, %p37
      %p39 = scmp.ne.s32.totalorder %s25, %s26
      %p40 = scmp.eq.s32.totalorder %s18, 1
      %p41 = por %p39, %p40
      %p43 = scmp.ne.s32.totalorder %s26, %s42
      %p44 = scmp.eq.s32.totalorder %s18, 0
      %p45 = por %p43, %p44
      %s47 = sadd.s32 %s46, 1
      %p50 = scmp.eq.s32.totalorder %s12, 1
      %p51 = scmp.ne.s32.totalorder %s46, %s48
      %p52 = scmp.eq.s32.totalorder %s12, 0
      %p53 = por %p51, %p52
      %p54 = scmp.ne.s32.totalorder %s46, %s48
      %p55 = scmp.eq.s32.totalorder %s17, 1
      %p56 = por %p54, %p55
      %p57 = scmp.ne.s32.totalorder %s48, %s49
      %p58 = scmp.eq.s32.totalorder %s17, 0
      %p59 = por %p57, %p58
      %p60 = scmp.ne.s32.totalorder %s48, %s49
      %p61 = scmp.eq.s32.totalorder %s18, 1
      %p62 = por %p60, %p61
      %p64 = scmp.ne.s32.totalorder %s49, %s63
      %p65 = scmp.eq.s32.totalorder %s18, 0
      %p66 = por %p64, %p65
      %s68 = sadd.s32 %s67, 1
      %p71 = scmp.eq.s32.totalorder %s12, 1
      %p72 = scmp.ne.s32.totalorder %s67, %s69
      %p73 = scmp.eq.s32.totalorder %s12, 0
      %p74 = por %p72, %p73
      %p75 = scmp.ne.s32.totalorder %s67, %s69
      %p76 = scmp.eq.s32.totalorder %s17, 1
      %p77 = por %p75, %p76
      %p78 = scmp.ne.s32.totalorder %s69, %s70
      %p79 = scmp.eq.s32.totalorder %s17, 0
      %p80 = por %p78, %p79
      %p81 = scmp.ne.s32.totalorder %s69, %s70
      %p82 = scmp.eq.s32.totalorder %s18, 1
      %p83 = por %p81, %p82
      %p85 = scmp.ne.s32.totalorder %s70, %s84
      %p86 = scmp.eq.s32.totalorder %s18, 0
      %p87 = por %p85, %p86
      %s88 = ssub.s32 %s12, %s19
      %p89 = scmp.eq.s32.totalorder %s88, 0
      %s91 = sadd.s32 %s90, 1
      %s92 = scalar_select %p89, %s90, %s91
      %p95 = pneg %p89
      %p96 = scmp.eq.s32.totalorder %s12, 1
      %p97 = por %p95, %p96
      %p98 = scmp.ne.s32.totalorder %s90, %s93
      %p99 = scmp.eq.s32.totalorder %s12, 0
      %p100 = por %p98, %p99
      %p101 = scmp.ne.s32.totalorder %s90, %s93
      %p102 = scmp.eq.s32.totalorder %s17, 1
      %p103 = por %p101, %p102
      %p104 = scmp.ne.s32.totalorder %s93, %s94
      %p105 = scmp.eq.s32.totalorder %s17, 0
      %p106 = por %p104, %p105
      %p107 = scmp.ne.s32.totalorder %s93, %s94
      %p108 = scmp.eq.s32.totalorder %s18, 1
      %p109 = por %p107, %p108
      %p111 = scmp.ne.s32.totalorder %s94, %s110
      %p112 = scmp.eq.s32.totalorder %s18, 0
      %p113 = por %p111, %p112
      %p114 = scmp.le.s32.totalorder 1, %s12
      %p115 = scmp.lt.s32.totalorder %s12, 3
      %p116 = pnand %p114, %p115
      %p117 = pneg %p116
      // Predicated region
      $region9: #{tpu_custom_call.1} parent=5 // pred_check
        _
      $region10: #{tpu_custom_call.1} parent=5 // pred_check_branch
        %119 = sbr.rel (%p116) target = $region12
      $region11: #{tpu_custom_call.1} parent=5 // pred_region
        %s120 = ssub.s32 %s12, 1
        // Predicated region
        $region13: #{tpu_custom_call.1} parent=11 // pred_check
          %p121 = pneg %p59
        $region14: #{tpu_custom_call.1} parent=11 // pred_check_branch
          %123 = sbr.rel (%p121) target = $region16
        $region15: #{tpu_custom_call.1} parent=11 // pred_region
          _
        $region16: #{tpu_custom_call.1} parent=11 // pred_fallthru
          _
        // Predicated region
        $region17: #{tpu_custom_call.1} parent=11 // pred_check
          %p124 = pneg %p80
        $region18: #{tpu_custom_call.1} parent=11 // pred_check_branch
          %126 = sbr.rel (%p124) target = $region20
        $region19: #{tpu_custom_call.1} parent=11 // pred_region
          _
        $region20: #{tpu_custom_call.1} parent=11 // pred_fallthru
          _
      $region12: #{tpu_custom_call.1} parent=5 // pred_fallthru
        _
      %p127 = scmp.lt.s32.totalorder %s12, 2
      // Predicated region
      $region21: #{tpu_custom_call.1} parent=5 // pred_check
        %p128 = pneg %p127
      $region22: #{tpu_custom_call.1} parent=5 // pred_check_branch
        %130 = sbr.rel (%p128) target = $region24
      $region23: #{tpu_custom_call.1} parent=5 // pred_region
        // Predicated region
        $region25: #{tpu_custom_call.1} parent=23 // pred_check
          %p131 = pneg %p32
        $region26: #{tpu_custom_call.1} parent=23 // pred_check_branch
          %133 = sbr.rel (%p131) target = $region28
        $region27: #{tpu_custom_call.1} parent=23 // pred_region
          %s134 = smul.u32 32, %s12
          %s135 = ssub.s32 63, %s134
          %p136 = scmp.lt.s32.totalorder %s135, 32
          %s137 = scalar_select %p136, %s135, 32
          %s138 = smul.u32 64, %s137
          %p139 = scmp.lt.s32.totalorder %s134, 62
          %s140 = scalar_select %p139, %s134, 62
          %s141 = smul.addr %s140, 4
          %s142 = scalar_lea.vmem %s0, %s141
          %s143 = smul.u32 32, %s12
          %s144 = ssub.s32 63, %s143
          %p145 = scmp.lt.s32.totalorder %s144, 32
          %s146 = scalar_select %p145, %s144, 32
          %s147 = smul.u32 64, %s146
        $region28: #{tpu_custom_call.1} parent=23 // pred_fallthru
          _
      $region24: #{tpu_custom_call.1} parent=5 // pred_fallthru
        _
      %p148 = scmp.le.s32.totalorder 1, %s12
      %p149 = scmp.lt.s32.totalorder %s12, 3
      %p150 = pnand %p148, %p149
      %p151 = pneg %p150
      // Predicated region
      $region29: #{tpu_custom_call.1} parent=5 // pred_check
        _
      $region30: #{tpu_custom_call.1} parent=5 // pred_check_branch
        %153 = sbr.rel (%p150) target = $region32
      $region31: #{tpu_custom_call.1} parent=5 // pred_region
        %s154 = ssub.s32 %s12, 1
        %s155 = smul.u32 32, %s17
        %s156 = ssub.s32 63, %s155
        %p157 = scmp.lt.s32.totalorder %s156, 32
        %s158 = scalar_select %p157, %s156, 32
        %s159 = smul.u32 64, %s158
        %p160 = scmp.lt.s32.totalorder %s155, 62
        %s161 = scalar_select %p160, %s155, 62
        %s162 = smul.addr %s161, 4
        %s163 = scalar_lea.vmem %s0, %s162
        %p164 = pneg %p38
        %p165 = pneg %p35
        %p166 = pneg %p59
        %p167 = pneg %p56
        %p168 = pneg %p80
        %p169 = pneg %p77
        %p170 = pneg %p106
        %p171 = pneg %p103
        %s172 = sand.u32 %s93, 1
        %s173 = scalar_lea.sflag [#allocation3], %s172
        %s174 = sand.u32 %s93, 1
        %s175 = smul.addr %s174, 128
        %s176 = scalar_lea.vmem [#allocation2], %s175
        %s177 = smul.u32 32, %s17
        %s178 = ssub.s32 63, %s177
        %p179 = scmp.lt.s32.totalorder %s178, 32
        %s180 = scalar_select %p179, %s178, 32
        %s181 = smul.u32 64, %s180
        %p182 = scmp.lt.s32.totalorder %s177, 62
        %s183 = scalar_select %p182, %s177, 62
        %s184 = smul.addr %s183, 4
        %s185 = scalar_lea.vmem %s0, %s184
        %s186 = smul.u32 32, %s17
        %s187 = ssub.s32 63, %s186
        %p188 = scmp.lt.s32.totalorder %s187, 32
        %s189 = scalar_select %p188, %s187, 32
        %s190 = smul.u32 64, %s189
        %s191 = smul.u32 32, %s17
        %s192 = ssub.s32 63, %s191
        %p193 = scmp.lt.s32.totalorder %s192, 32
        %s194 = scalar_select %p193, %s192, 32
        %s195 = smul.u32 64, %s194
        %v197 = vld [vmem:[%s185] sm:$0xf]
        %v198 = vld [vmem:[%s185 + $0x4] sm:$0xf]
        %v199 = vld [vmem:[%s185 + $0x8] sm:$0xf]
        %v200 = vld [vmem:[%s185 + $0xc] sm:$0xf]
        %v201 = vld [vmem:[%s185 + $0x10] sm:$0xf]
        %v202 = vld [vmem:[%s185 + $0x14] sm:$0xf]
        %v203 = vld [vmem:[%s185 + $0x18] sm:$0xf]
        %v204 = vld [vmem:[%s185 + $0x1c] sm:$0xf]
        %v205 = vld [vmem:[%s185 + $0x20] sm:$0xf]
        %v206 = vld [vmem:[%s185 + $0x24] sm:$0xf]
        %v207 = vld [vmem:[%s185 + $0x28] sm:$0xf]
        %v208 = vld [vmem:[%s185 + $0x2c] sm:$0xf]
        %v209 = vld [vmem:[%s185 + $0x30] sm:$0xf]
        %v210 = vld [vmem:[%s185 + $0x34] sm:$0xf]
        %v211 = vld [vmem:[%s185 + $0x38] sm:$0xf]
        %v212 = vld [vmem:[%s185 + $0x3c] sm:$0xf]
        %v213 = vld [vmem:[%s185 + $0x40] sm:$0xf]
        %v214 = vld [vmem:[%s185 + $0x44] sm:$0xf]
        %v215 = vld [vmem:[%s185 + $0x48] sm:$0xf]
        %v216 = vld [vmem:[%s185 + $0x4c] sm:$0xf]
        %v217 = vld [vmem:[%s185 + $0x50] sm:$0xf]
        %v218 = vld [vmem:[%s185 + $0x54] sm:$0xf]
        %v219 = vld [vmem:[%s185 + $0x58] sm:$0xf]
        %v220 = vld [vmem:[%s185 + $0x5c] sm:$0xf]
        %v221 = vld [vmem:[%s185 + $0x60] sm:$0xf]
        %v222 = vld [vmem:[%s185 + $0x64] sm:$0xf]
        %v223 = vld [vmem:[%s185 + $0x68] sm:$0xf]
        %v224 = vld [vmem:[%s185 + $0x6c] sm:$0xf]
        %v225 = vld [vmem:[%s185 + $0x70] sm:$0xf]
        %v226 = vld [vmem:[%s185 + $0x74] sm:$0xf]
        %v227 = vld [vmem:[%s185 + $0x78] sm:$0xf]
        %v228 = vld [vmem:[%s185 + $0x7c] sm:$0xf]
        %v229 = vld [vmem:[%s1] sm:$0xff]
        %v230 = vld [vmem:[%s1 + $0x8] sm:$0xff]
        %v231 = vld [vmem:[%s1 + $0x10] sm:$0xff]
        %v232 = vld [vmem:[%s1 + $0x18] sm:$0x33]
        %v265 = vunpack.c.l.b16 %v197
        %v266 = vunpack.c.l.b16 %v198
        %v267 = vunpack.c.l.b16 %v199
        %v268 = vunpack.c.l.b16 %v200
        %v269 = vunpack.c.l.b16 %v201
        %v270 = vunpack.c.l.b16 %v202
        %v271 = vunpack.c.l.b16 %v203
        %v272 = vunpack.c.l.b16 %v204
        %v273 = vunpack.c.l.b16 %v205
        %v274 = vunpack.c.l.b16 %v206
        %v275 = vunpack.c.l.b16 %v207
        %v276 = vunpack.c.l.b16 %v208
        %v277 = vunpack.c.l.b16 %v209
        %v278 = vunpack.c.l.b16 %v210
        %v279 = vunpack.c.l.b16 %v211
        %v280 = vunpack.c.l.b16 %v212
        %v281 = vunpack.c.l.b16 %v213
        %v282 = vunpack.c.l.b16 %v214
        %v283 = vunpack.c.l.b16 %v215
        %v284 = vunpack.c.l.b16 %v216
        %v285 = vunpack.c.l.b16 %v217
        %v286 = vunpack.c.l.b16 %v218
        %v287 = vunpack.c.l.b16 %v219
        %v288 = vunpack.c.l.b16 %v220
        %v289 = vunpack.c.l.b16 %v221
        %v290 = vunpack.c.l.b16 %v222
        %v291 = vunpack.c.l.b16 %v223
        %v292 = vunpack.c.l.b16 %v224
        %v293 = vunpack.c.l.b16 %v225
        %v294 = vunpack.c.l.b16 %v226
        %v295 = vunpack.c.l.b16 %v227
        %v296 = vunpack.c.l.b16 %v228
        %v297 = vpack.c.b16 %v266, %v265
        %v298 = vpack.c.b16 %v268, %v267
        %v299 = vpack.c.b16 %v270, %v269
        %v300 = vpack.c.b16 %v272, %v271
        %v301 = vpack.c.b16 %v274, %v273
        %v302 = vpack.c.b16 %v276, %v275
        %v303 = vpack.c.b16 %v278, %v277
        %v304 = vpack.c.b16 %v280, %v279
        %v305 = vpack.c.b16 %v282, %v281
        %v306 = vpack.c.b16 %v284, %v283
        %v307 = vpack.c.b16 %v286, %v285
        %v308 = vpack.c.b16 %v288, %v287
        %v309 = vpack.c.b16 %v290, %v289
        %v310 = vpack.c.b16 %v292, %v291
        %v311 = vpack.c.b16 %v294, %v293
        %v312 = vpack.c.b16 %v296, %v295
        %v317 = vunpack.c.l.b16 %v229
        %v318 = vunpack.c.h.b16 %v229
        %v319 = vunpack.c.l.b16 %v230
        %v320 = vunpack.c.h.b16 %v230
        %v321 = vunpack.c.l.b16 %v231
        %v322 = vunpack.c.h.b16 %v231
        %v323 = vunpack.c.l.b16 %v232
        %v324 = vunpack.c.h.b16 %v232
        %v325 = vpack.c.b16 %v319, %v317
        %v326 = vpack.c.b16 %v320, %v318
        %v327 = vpack.c.b16 %v323, %v321
        %v328 = vpack.c.b16 %v324, %v322
        %vm331 = vcmask 228352
        %v333 = vsel %vm331, %v297, 0
        %v336 = vsel %vm331, %v298, 0
        %v339 = vsel %vm331, %v299, 0
        %v342 = vsel %vm331, %v300, 0
        %v345 = vsel %vm331, %v301, 0
        %v348 = vsel %vm331, %v302, 0
        %v351 = vsel %vm331, %v303, 0
        %v354 = vsel %vm331, %v304, 0
        %v357 = vsel %vm331, %v305, 0
        %v360 = vsel %vm331, %v306, 0
        %v363 = vsel %vm331, %v307, 0
        %v366 = vsel %vm331, %v308, 0
        %v369 = vsel %vm331, %v309, 0
        %v372 = vsel %vm331, %v310, 0
        %v375 = vsel %vm331, %v311, 0
        %v378 = vsel %vm331, %v312, 0
        %vm380 = vcmask 1045504
        %v382 = vsel %vm380, %v327, 0
        %v385 = vsel %vm380, %v328, 0
        %387 = vmatprep.subr.bf16.mxu0 %v326
        %388 = vmatpush1.bf16.msra.mxu0 %v325
        %389 = vmatprep.subr.bf16.mxu0 %v385
        %390 = vmatpush1.bf16.msra.mxu0 %v382
        %391 = vmatprep.subr.bf16.mxu0 0
        %392 = vmatpush1.bf16.msra.mxu0 0
        %393 = vmatprep.subr.bf16.mxu0 0
        %394 = vmatpush1.bf16.msra.mxu0 0
        %395 = vmatprep.subr.bf16.mxu0 0
        %396 = vmatpush1.bf16.msra.mxu0 0
        %397 = vmatprep.subr.bf16.mxu0 0
        %398 = vmatpush1.bf16.msra.mxu0 0
        %399 = vmatprep.subr.bf16.mxu0 0
        %400 = vmatpush1.bf16.msra.mxu0 0
        %401 = vmatprep.subr.bf16.mxu0 0
        %402 = vmatpush1.bf16.msra.mxu0 0
        %403 = vmatprep.subr.bf16.mxu0 0
        %404 = vmatpush1.bf16.msra.mxu0 0
        %405 = vmatprep.subr.bf16.mxu0 0
        %406 = vmatpush1.bf16.msra.mxu0 0
        %407 = vmatprep.subr.bf16.mxu0 0
        %408 = vmatpush1.bf16.msra.mxu0 0
        %409 = vmatprep.subr.bf16.mxu0 0
        %410 = vmatpush1.bf16.msra.mxu0 0
        %411 = vmatprep.subr.bf16.mxu0 0
        %412 = vmatpush1.bf16.msra.mxu0 0
        %413 = vmatprep.subr.bf16.mxu0 0
        %414 = vmatpush1.bf16.msra.mxu0 0
        %415 = vmatprep.subr.bf16.mxu0 0
        %416 = vmatpush1.bf16.msra.mxu0 0
        %417 = vmatprep.subr.bf16.mxu0 0
        %418 = vmatpush1.bf16.msra.mxu0 0
        %419 = vmatprep.mubr.bf16.mxu0 0
        %420 = vmatmul.mubr.bf16.gmra.mrb[0].mxu0 %v333
        %v421 = vpop.f32.mrb[0].mxu0
        %v422 = vadd.f32 0.0, %v421
        %v423 = vpop.f32.mrb[0].mxu0
        %v424 = vadd.f32 0.0, %v423
        %v425 = vpop.f32.mrb[0].mxu0
        %v426 = vadd.f32 0.0, %v425
        %v427 = vpop.f32.mrb[0].mxu0
        %v428 = vadd.f32 0.0, %v427
        %429 = vmatprep.mubr.bf16.mxu0 0
        %430 = vmatmul.mubr.bf16.gmra.mrb[0].mxu0 %v336
        %v431 = vpop.f32.mrb[0].mxu0
        %v432 = vadd.f32 0.0, %v431
        %v433 = vpop.f32.mrb[0].mxu0
        %v434 = vadd.f32 0.0, %v433
        %v435 = vpop.f32.mrb[0].mxu0
        %v436 = vadd.f32 0.0, %v435
        %v437 = vpop.f32.mrb[0].mxu0
        %v438 = vadd.f32 0.0, %v437
        %439 = vmatprep.mubr.bf16.mxu0 0
        %440 = vmatmul.mubr.bf16.gmra.mrb[0].mxu0 %v339
        %v441 = vpop.f32.mrb[0].mxu0
        %v442 = vadd.f32 0.0, %v441
        %v443 = vpop.f32.mrb[0].mxu0
        %v444 = vadd.f32 0.0, %v443
        %v445 = vpop.f32.mrb[0].mxu0
        %v446 = vadd.f32 0.0, %v445
        %v447 = vpop.f32.mrb[0].mxu0
        %v448 = vadd.f32 0.0, %v447
        %449 = vmatprep.mubr.bf16.mxu0 0
        %450 = vmatmul.mubr.bf16.gmra.mrb[0].mxu0 %v342
        %v451 = vpop.f32.mrb[0].mxu0
        %v452 = vadd.f32 0.0, %v451
        %v453 = vpop.f32.mrb[0].mxu0
        %v454 = vadd.f32 0.0, %v453
        %v455 = vpop.f32.mrb[0].mxu0
        %v456 = vadd.f32 0.0, %v455
        %v457 = vpop.f32.mrb[0].mxu0
        %v458 = vadd.f32 0.0, %v457
        %459 = vmatprep.mubr.bf16.mxu0 0
        %460 = vmatmul.mubr.bf16.gmra.mrb[0].mxu0 %v345
        %v461 = vpop.f32.mrb[0].mxu0
        %v462 = vadd.f32 0.0, %v461
        %v463 = vpop.f32.mrb[0].mxu0
        %v464 = vadd.f32 0.0, %v463
        %v465 = vpop.f32.mrb[0].mxu0
        %v466 = vadd.f32 0.0, %v465
        %v467 = vpop.f32.mrb[0].mxu0
        %v468 = vadd.f32 0.0, %v467
        %469 = vmatprep.mubr.bf16.mxu0 0
        %470 = vmatmul.mubr.bf16.gmra.mrb[0].mxu0 %v348
        %v471 = vpop.f32.mrb[0].mxu0
        %v472 = vadd.f32 0.0, %v471
        %v473 = vpop.f32.mrb[0].mxu0
        %v474 = vadd.f32 0.0, %v473
        %v475 = vpop.f32.mrb[0].mxu0
        %v476 = vadd.f32 0.0, %v475
        %v477 = vpop.f32.mrb[0].mxu0
        %v478 = vadd.f32 0.0, %v477
        %479 = vmatprep.mubr.bf16.mxu0 0
        %480 = vmatmul.mubr.bf16.gmra.mrb[0].mxu0 %v351
        %v481 = vpop.f32.mrb[0].mxu0
        %v482 = vadd.f32 0.0, %v481
        %v483 = vpop.f32.mrb[0].mxu0
        %v484 = vadd.f32 0.0, %v483
        %v485 = vpop.f32.mrb[0].mxu0
        %v486 = vadd.f32 0.0, %v485
        %v487 = vpop.f32.mrb[0].mxu0
        %v488 = vadd.f32 0.0, %v487
        %489 = vmatprep.mubr.bf16.mxu0 0
        %490 = vmatmul.mubr.bf16.gmra.mrb[0].mxu0 %v354
        %v491 = vpop.f32.mrb[0].mxu0
        %v492 = vadd.f32 0.0, %v491
        %v493 = vpop.f32.mrb[0].mxu0
        %v494 = vadd.f32 0.0, %v493
        %v495 = vpop.f32.mrb[0].mxu0
        %v496 = vadd.f32 0.0, %v495
        %v497 = vpop.f32.mrb[0].mxu0
        %v498 = vadd.f32 0.0, %v497
        %499 = vmatprep.mubr.bf16.mxu0 0
        %500 = vmatmul.mubr.bf16.gmra.mrb[0].mxu0 %v357
        %v501 = vpop.f32.mrb[0].mxu0
        %v502 = vadd.f32 0.0, %v501
        %v503 = vpop.f32.mrb[0].mxu0
        %v504 = vadd.f32 0.0, %v503
        %v505 = vpop.f32.mrb[0].mxu0
        %v506 = vadd.f32 0.0, %v505
        %v507 = vpop.f32.mrb[0].mxu0
        %v508 = vadd.f32 0.0, %v507
        %509 = vmatprep.mubr.bf16.mxu0 0
        %510 = vmatmul.mubr.bf16.gmra.mrb[0].mxu0 %v360
        %v511 = vpop.f32.mrb[0].mxu0
        %v512 = vadd.f32 0.0, %v511
        %v513 = vpop.f32.mrb[0].mxu0
        %v514 = vadd.f32 0.0, %v513
        %v515 = vpop.f32.mrb[0].mxu0
        %v516 = vadd.f32 0.0, %v515
        %v517 = vpop.f32.mrb[0].mxu0
        %v518 = vadd.f32 0.0, %v517
        %519 = vmatprep.mubr.bf16.mxu0 0
        %520 = vmatmul.mubr.bf16.gmra.mrb[0].mxu0 %v363
        %v521 = vpop.f32.mrb[0].mxu0
        %v522 = vadd.f32 0.0, %v521
        %v523 = vpop.f32.mrb[0].mxu0
        %v524 = vadd.f32 0.0, %v523
        %v525 = vpop.f32.mrb[0].mxu0
        %v526 = vadd.f32 0.0, %v525
        %v527 = vpop.f32.mrb[0].mxu0
        %v528 = vadd.f32 0.0, %v527
        %529 = vmatprep.mubr.bf16.mxu0 0
        %530 = vmatmul.mubr.bf16.gmra.mrb[0].mxu0 %v366
        %v531 = vpop.f32.mrb[0].mxu0
        %v532 = vadd.f32 0.0, %v531
        %v533 = vpop.f32.mrb[0].mxu0
        %v534 = vadd.f32 0.0, %v533
        %v535 = vpop.f32.mrb[0].mxu0
        %v536 = vadd.f32 0.0, %v535
        %v537 = vpop.f32.mrb[0].mxu0
        %v538 = vadd.f32 0.0, %v537
        %539 = vmatprep.mubr.bf16.mxu0 0
        %540 = vmatmul.mubr.bf16.gmra.mrb[0].mxu0 %v369
        %v541 = vpop.f32.mrb[0].mxu0
        %v542 = vadd.f32 0.0, %v541
        %v543 = vpop.f32.mrb[0].mxu0
        %v544 = vadd.f32 0.0, %v543
        %v545 = vpop.f32.mrb[0].mxu0
        %v546 = vadd.f32 0.0, %v545
        %v547 = vpop.f32.mrb[0].mxu0
        %v548 = vadd.f32 0.0, %v547
        %549 = vmatprep.mubr.bf16.mxu0 0
        %550 = vmatmul.mubr.bf16.gmra.mrb[0].mxu0 %v372
        %v551 = vpop.f32.mrb[0].mxu0
        %v552 = vadd.f32 0.0, %v551
        %v553 = vpop.f32.mrb[0].mxu0
        %v554 = vadd.f32 0.0, %v553
        %v555 = vpop.f32.mrb[0].mxu0
        %v556 = vadd.f32 0.0, %v555
        %v557 = vpop.f32.mrb[0].mxu0
        %v558 = vadd.f32 0.0, %v557
        %559 = vmatprep.mubr.bf16.mxu0 0
        %560 = vmatmul.mubr.bf16.gmra.mrb[0].mxu0 %v375
        %v561 = vpop.f32.mrb[0].mxu0
        %v562 = vadd.f32 0.0, %v561
        %v563 = vpop.f32.mrb[0].mxu0
        %v564 = vadd.f32 0.0, %v563
        %v565 = vpop.f32.mrb[0].mxu0
        %v566 = vadd.f32 0.0, %v565
        %v567 = vpop.f32.mrb[0].mxu0
        %v568 = vadd.f32 0.0, %v567
        %569 = vmatprep.mubr.bf16.mxu0 0
        %570 = vmatmul.mubr.bf16.gmra.mrb[0].mxu0 %v378
        %v571 = vpop.f32.mrb[0].mxu0
        %v572 = vadd.f32 0.0, %v571
        %v573 = vpop.f32.mrb[0].mxu0
        %v574 = vadd.f32 0.0, %v573
        %v575 = vpop.f32.mrb[0].mxu0
        %v576 = vadd.f32 0.0, %v575
        %v577 = vpop.f32.mrb[0].mxu0
        %v578 = vadd.f32 0.0, %v577
        %579 = vdwg.mxu0
        %v580 = vmul.f32 %v422, %v424
        %v581 = vmul.f32 %v426, %v428
        %v582 = vmul.f32 %v432, %v434
        %v583 = vmul.f32 %v436, %v438
        %v584 = vmul.f32 %v442, %v444
        %v585 = vmul.f32 %v446, %v448
        %v586 = vmul.f32 %v452, %v454
        %v587 = vmul.f32 %v456, %v458
        %v588 = vmul.f32 %v462, %v464
        %v589 = vmul.f32 %v466, %v468
        %v590 = vmul.f32 %v472, %v474
        %v591 = vmul.f32 %v476, %v478
        %v592 = vmul.f32 %v482, %v484
        %v593 = vmul.f32 %v486, %v488
        %v594 = vmul.f32 %v492, %v494
        %v595 = vmul.f32 %v496, %v498
        %v596 = vmul.f32 %v502, %v504
        %v597 = vmul.f32 %v506, %v508
        %v598 = vmul.f32 %v512, %v514
        %v599 = vmul.f32 %v516, %v518
        %v600 = vmul.f32 %v522, %v524
        %v601 = vmul.f32 %v526, %v528
        %v602 = vmul.f32 %v532, %v534
        %v603 = vmul.f32 %v536, %v538
        %v604 = vmul.f32 %v542, %v544
        %v605 = vmul.f32 %v546, %v548
        %v606 = vmul.f32 %v552, %v554
        %v607 = vmul.f32 %v556, %v558
        %v608 = vmul.f32 %v562, %v564
        %v609 = vmul.f32 %v566, %v568
        %v610 = vmul.f32 %v572, %v574
        %v611 = vmul.f32 %v576, %v578
        %v612 = vpack.c.bf16 %v581, %v580
        %v613 = vpack.c.bf16 %v583, %v582
        %v614 = vpack.c.bf16 %v585, %v584
        %v615 = vpack.c.bf16 %v587, %v586
        %v616 = vpack.c.bf16 %v589, %v588
        %v617 = vpack.c.bf16 %v591, %v590
        %v618 = vpack.c.bf16 %v593, %v592
        %v619 = vpack.c.bf16 %v595, %v594
        %v620 = vpack.c.bf16 %v597, %v596
        %v621 = vpack.c.bf16 %v599, %v598
        %v622 = vpack.c.bf16 %v601, %v600
        %v623 = vpack.c.bf16 %v603, %v602
        %v624 = vpack.c.bf16 %v605, %v604
        %v625 = vpack.c.bf16 %v607, %v606
        %v626 = vpack.c.bf16 %v609, %v608
        %v627 = vpack.c.bf16 %v611, %v610
        %v628 = vld [vmem:[%s2] sm:$0xf]
        %v629 = vld [vmem:[%s2 + $0x4] sm:$0xf]
        %v630 = vld [vmem:[%s2 + $0x8] sm:$0xf]
        %v631 = vld [vmem:[%s2 + $0xc] sm:$0xf]
        %v632 = vld [vmem:[%s2 + $0x10] sm:$0xf]
        %v633 = vld [vmem:[%s2 + $0x14] sm:$0xf]
        %v634 = vld [vmem:[%s2 + $0x18] sm:$0xf]
        %v635 = vld [vmem:[%s2 + $0x1c] sm:$0xf]
        %v636 = vld [vmem:[%s2 + $0x20] sm:$0xf]
        %v637 = vld [vmem:[%s2 + $0x24] sm:$0xf]
        %v638 = vld [vmem:[%s2 + $0x28] sm:$0xf]
        %v639 = vld [vmem:[%s2 + $0x2c] sm:$0xf]
        %v640 = vld [vmem:[%s2 + $0x30] sm:$0xf]
        %v641 = vld [vmem:[%s2 + $0x34] sm:$0xf]
        %v642 = vld [vmem:[%s2 + $0x38] sm:$0xf]
        %v643 = vld [vmem:[%s2 + $0x3c] sm:$0xf]
        %v660 = vunpack.c.l.b16 %v628
        %v661 = vunpack.c.l.b16 %v629
        %v662 = vunpack.c.l.b16 %v630
        %v663 = vunpack.c.l.b16 %v631
        %v664 = vunpack.c.l.b16 %v632
        %v665 = vunpack.c.l.b16 %v633
        %v666 = vunpack.c.l.b16 %v634
        %v667 = vunpack.c.l.b16 %v635
        %v668 = vunpack.c.l.b16 %v636
        %v669 = vunpack.c.l.b16 %v637
        %v670 = vunpack.c.l.b16 %v638
        %v671 = vunpack.c.l.b16 %v639
        %v672 = vunpack.c.l.b16 %v640
        %v673 = vunpack.c.l.b16 %v641
        %v674 = vunpack.c.l.b16 %v642
        %v675 = vunpack.c.l.b16 %v643
        %v676 = vpack.c.b16 %v661, %v660
        %v677 = vpack.c.b16 %v663, %v662
        %v678 = vpack.c.b16 %v665, %v664
        %v679 = vpack.c.b16 %v667, %v666
        %v680 = vpack.c.b16 %v669, %v668
        %v681 = vpack.c.b16 %v671, %v670
        %v682 = vpack.c.b16 %v673, %v672
        %v683 = vpack.c.b16 %v675, %v674
        %692 = vmatprep.subr.bf16.mxu0 0
        %693 = vmatpush1.bf16.msra.mxu0 %v676
        %694 = vmatprep.subr.bf16.mxu0 0
        %695 = vmatpush1.bf16.msra.mxu0 %v677
        %696 = vmatprep.subr.bf16.mxu0 0
        %697 = vmatpush1.bf16.msra.mxu0 %v678
        %698 = vmatprep.subr.bf16.mxu0 0
        %699 = vmatpush1.bf16.msra.mxu0 %v679
        %700 = vmatprep.subr.bf16.mxu0 0
        %701 = vmatpush1.bf16.msra.mxu0 %v680
        %702 = vmatprep.subr.bf16.mxu0 0
        %703 = vmatpush1.bf16.msra.mxu0 %v681
        %704 = vmatprep.subr.bf16.mxu0 0
        %705 = vmatpush1.bf16.msra.mxu0 %v682
        %706 = vmatprep.subr.bf16.mxu0 0
        %707 = vmatpush1.bf16.msra.mxu0 %v683
        %708 = vmatprep.subr.bf16.mxu0 0
        %709 = vmatpush1.bf16.msra.mxu0 0
        %710 = vmatprep.subr.bf16.mxu0 0
        %711 = vmatpush1.bf16.msra.mxu0 0
        %712 = vmatprep.subr.bf16.mxu0 0
        %713 = vmatpush1.bf16.msra.mxu0 0
        %714 = vmatprep.subr.bf16.mxu0 0
        %715 = vmatpush1.bf16.msra.mxu0 0
        %716 = vmatprep.subr.bf16.mxu0 0
        %717 = vmatpush1.bf16.msra.mxu0 0
        %718 = vmatprep.subr.bf16.mxu0 0
        %719 = vmatpush1.bf16.msra.mxu0 0
        %720 = vmatprep.subr.bf16.mxu0 0
        %721 = vmatpush1.bf16.msra.mxu0 0
        %722 = vmatprep.subr.bf16.mxu0 0
        %723 = vmatpush1.bf16.msra.mxu0 0
        %724 = vmatprep.mubr.bf16.mxu0 0
        %725 = vmatmul.mubr.bf16.gmra.mrb[0].mxu0 %v612
        %v726 = vpop.f32.mrb[0].mxu0
        %v727 = vadd.f32 0.0, %v726
        %v728 = vpop.f32.mrb[0].mxu0
        %v729 = vpop.f32.mrb[0].mxu0
        %v730 = vadd.f32 0.0, %v729
        %v731 = vpop.f32.mrb[0].mxu0
        %732 = vmatprep.mubr.bf16.mxu0 0
        %733 = vmatmul.mubr.bf16.gmra.mrb[0].mxu0 %v613
        %v734 = vpop.f32.mrb[0].mxu0
        %v735 = vadd.f32 0.0, %v734
        %v736 = vpop.f32.mrb[0].mxu0
        %v737 = vpop.f32.mrb[0].mxu0
        %v738 = vadd.f32 0.0, %v737
        %v739 = vpop.f32.mrb[0].mxu0
        %740 = vmatprep.mubr.bf16.mxu0 0
        %741 = vmatmul.mubr.bf16.gmra.mrb[0].mxu0 %v614
        %v742 = vpop.f32.mrb[0].mxu0
        %v743 = vadd.f32 0.0, %v742
        %v744 = vpop.f32.mrb[0].mxu0
        %v745 = vpop.f32.mrb[0].mxu0
        %v746 = vadd.f32 0.0, %v745
        %v747 = vpop.f32.mrb[0].mxu0
        %748 = vmatprep.mubr.bf16.mxu0 0
        %749 = vmatmul.mubr.bf16.gmra.mrb[0].mxu0 %v615
        %v750 = vpop.f32.mrb[0].mxu0
        %v751 = vadd.f32 0.0, %v750
        %v752 = vpop.f32.mrb[0].mxu0
        %v753 = vpop.f32.mrb[0].mxu0
        %v754 = vadd.f32 0.0, %v753
        %v755 = vpop.f32.mrb[0].mxu0
        %756 = vmatprep.mubr.bf16.mxu0 0
        %757 = vmatmul.mubr.bf16.gmra.mrb[0].mxu0 %v616
        %v758 = vpop.f32.mrb[0].mxu0
        %v759 = vadd.f32 0.0, %v758
        %v760 = vpop.f32.mrb[0].mxu0
        %v761 = vpop.f32.mrb[0].mxu0
        %v762 = vadd.f32 0.0, %v761
        %v763 = vpop.f32.mrb[0].mxu0
        %764 = vmatprep.mubr.bf16.mxu0 0
        %765 = vmatmul.mubr.bf16.gmra.mrb[0].mxu0 %v617
        %v766 = vpop.f32.mrb[0].mxu0
        %v767 = vadd.f32 0.0, %v766
        %v768 = vpop.f32.mrb[0].mxu0
        %v769 = vpop.f32.mrb[0].mxu0
        %v770 = vadd.f32 0.0, %v769
        %v771 = vpop.f32.mrb[0].mxu0
        %772 = vmatprep.mubr.bf16.mxu0 0
        %773 = vmatmul.mubr.bf16.gmra.mrb[0].mxu0 %v618
        %v774 = vpop.f32.mrb[0].mxu0
        %v775 = vadd.f32 0.0, %v774
        %v776 = vpop.f32.mrb[0].mxu0
        %v777 = vpop.f32.mrb[0].mxu0
        %v778 = vadd.f32 0.0, %v777
        %v779 = vpop.f32.mrb[0].mxu0
        %780 = vmatprep.mubr.bf16.mxu0 0
        %781 = vmatmul.mubr.bf16.gmra.mrb[0].mxu0 %v619
        %v782 = vpop.f32.mrb[0].mxu0
        %v783 = vadd.f32 0.0, %v782
        %v784 = vpop.f32.mrb[0].mxu0
        %v785 = vpop.f32.mrb[0].mxu0
        %v786 = vadd.f32 0.0, %v785
        %v787 = vpop.f32.mrb[0].mxu0
        %788 = vmatprep.mubr.bf16.mxu0 0
        %789 = vmatmul.mubr.bf16.gmra.mrb[0].mxu0 %v620
        %v790 = vpop.f32.mrb[0].mxu0
        %v791 = vadd.f32 0.0, %v790
        %v792 = vpop.f32.mrb[0].mxu0
        %v793 = vpop.f32.mrb[0].mxu0
        %v794 = vadd.f32 0.0, %v793
        %v795 = vpop.f32.mrb[0].mxu0
        %796 = vmatprep.mubr.bf16.mxu0 0
        %797 = vmatmul.mubr.bf16.gmra.mrb[0].mxu0 %v621
        %v798 = vpop.f32.mrb[0].mxu0
        %v799 = vadd.f32 0.0, %v798
        %v800 = vpop.f32.mrb[0].mxu0
        %v801 = vpop.f32.mrb[0].mxu0
        %v802 = vadd.f32 0.0, %v801
        %v803 = vpop.f32.mrb[0].mxu0
        %804 = vmatprep.mubr.bf16.mxu0 0
        %805 = vmatmul.mubr.bf16.gmra.mrb[0].mxu0 %v622
        %v806 = vpop.f32.mrb[0].mxu0
        %v807 = vadd.f32 0.0, %v806
        %v808 = vpop.f32.mrb[0].mxu0
        %v809 = vpop.f32.mrb[0].mxu0
        %v810 = vadd.f32 0.0, %v809
        %v811 = vpop.f32.mrb[0].mxu0
        %812 = vmatprep.mubr.bf16.mxu0 0
        %813 = vmatmul.mubr.bf16.gmra.mrb[0].mxu0 %v623
        %v814 = vpop.f32.mrb[0].mxu0
        %v815 = vadd.f32 0.0, %v814
        %v816 = vpop.f32.mrb[0].mxu0
        %v817 = vpop.f32.mrb[0].mxu0
        %v818 = vadd.f32 0.0, %v817
        %v819 = vpop.f32.mrb[0].mxu0
        %820 = vmatprep.mubr.bf16.mxu0 0
        %821 = vmatmul.mubr.bf16.gmra.mrb[0].mxu0 %v624
        %v822 = vpop.f32.mrb[0].mxu0
        %v823 = vadd.f32 0.0, %v822
        %v824 = vpop.f32.mrb[0].mxu0
        %v825 = vpop.f32.mrb[0].mxu0
        %v826 = vadd.f32 0.0, %v825
        %v827 = vpop.f32.mrb[0].mxu0
        %828 = vmatprep.mubr.bf16.mxu0 0
        %829 = vmatmul.mubr.bf16.gmra.mrb[0].mxu0 %v625
        %v830 = vpop.f32.mrb[0].mxu0
        %v831 = vadd.f32 0.0, %v830
        %v832 = vpop.f32.mrb[0].mxu0
        %v833 = vpop.f32.mrb[0].mxu0
        %v834 = vadd.f32 0.0, %v833
        %v835 = vpop.f32.mrb[0].mxu0
        %836 = vmatprep.mubr.bf16.mxu0 0
        %837 = vmatmul.mubr.bf16.gmra.mrb[0].mxu0 %v626
        %v838 = vpop.f32.mrb[0].mxu0
        %v839 = vadd.f32 0.0, %v838
        %v840 = vpop.f32.mrb[0].mxu0
        %v841 = vpop.f32.mrb[0].mxu0
        %v842 = vadd.f32 0.0, %v841
        %v843 = vpop.f32.mrb[0].mxu0
        %844 = vmatprep.mubr.bf16.mxu0 0
        %845 = vmatmul.mubr.bf16.gmra.mrb[0].mxu0 %v627
        %v846 = vpop.f32.mrb[0].mxu0
        %v847 = vadd.f32 0.0, %v846
        %v848 = vpop.f32.mrb[0].mxu0
        %v849 = vpop.f32.mrb[0].mxu0
        %v850 = vadd.f32 0.0, %v849
        %v851 = vpop.f32.mrb[0].mxu0
        %852 = vdwg.mxu0
        %v853 = vpack.c.bf16 %v730, %v727
        %v854 = vpack.c.bf16 %v738, %v735
        %v855 = vpack.c.bf16 %v746, %v743
        %v856 = vpack.c.bf16 %v754, %v751
        %v857 = vpack.c.bf16 %v762, %v759
        %v858 = vpack.c.bf16 %v770, %v767
        %v859 = vpack.c.bf16 %v778, %v775
        %v860 = vpack.c.bf16 %v786, %v783
        %v861 = vpack.c.bf16 %v794, %v791
        %v862 = vpack.c.bf16 %v802, %v799
        %v863 = vpack.c.bf16 %v810, %v807
        %v864 = vpack.c.bf16 %v818, %v815
        %v865 = vpack.c.bf16 %v826, %v823
        %v866 = vpack.c.bf16 %v834, %v831
        %v867 = vpack.c.bf16 %v842, %v839
        %v868 = vpack.c.bf16 %v850, %v847
        %v885 = vunpack.c.l.b16 %v853
        %v886 = vunpack.c.h.b16 %v853
        %v887 = vunpack.c.l.b16 %v854
        %v888 = vunpack.c.h.b16 %v854
        %v889 = vunpack.c.l.b16 %v855
        %v890 = vunpack.c.h.b16 %v855
        %v891 = vunpack.c.l.b16 %v856
        %v892 = vunpack.c.h.b16 %v856
        %v893 = vunpack.c.l.b16 %v857
        %v894 = vunpack.c.h.b16 %v857
        %v895 = vunpack.c.l.b16 %v858
        %v896 = vunpack.c.h.b16 %v858
        %v897 = vunpack.c.l.b16 %v859
        %v898 = vunpack.c.h.b16 %v859
        %v899 = vunpack.c.l.b16 %v860
        %v900 = vunpack.c.h.b16 %v860
        %v901 = vunpack.c.l.b16 %v861
        %v902 = vunpack.c.h.b16 %v861
        %v903 = vunpack.c.l.b16 %v862
        %v904 = vunpack.c.h.b16 %v862
        %v905 = vunpack.c.l.b16 %v863
        %v906 = vunpack.c.h.b16 %v863
        %v907 = vunpack.c.l.b16 %v864
        %v908 = vunpack.c.h.b16 %v864
        %v909 = vunpack.c.l.b16 %v865
        %v910 = vunpack.c.h.b16 %v865
        %v911 = vunpack.c.l.b16 %v866
        %v912 = vunpack.c.h.b16 %v866
        %v913 = vunpack.c.l.b16 %v867
        %v914 = vunpack.c.h.b16 %v867
        %v915 = vunpack.c.l.b16 %v868
        %v916 = vunpack.c.h.b16 %v868
        %v917 = vpack.c.b16 %v885, %v885
        %v918 = vpack.c.b16 %v886, %v886
        %v919 = vpack.c.b16 %v887, %v887
        %v920 = vpack.c.b16 %v888, %v888
        %v921 = vpack.c.b16 %v889, %v889
        %v922 = vpack.c.b16 %v890, %v890
        %v923 = vpack.c.b16 %v891, %v891
        %v924 = vpack.c.b16 %v892, %v892
        %v925 = vpack.c.b16 %v893, %v893
        %v926 = vpack.c.b16 %v894, %v894
        %v927 = vpack.c.b16 %v895, %v895
        %v928 = vpack.c.b16 %v896, %v896
        %v929 = vpack.c.b16 %v897, %v897
        %v930 = vpack.c.b16 %v898, %v898
        %v931 = vpack.c.b16 %v899, %v899
        %v932 = vpack.c.b16 %v900, %v900
        %v933 = vpack.c.b16 %v901, %v901
        %v934 = vpack.c.b16 %v902, %v902
        %v935 = vpack.c.b16 %v903, %v903
        %v936 = vpack.c.b16 %v904, %v904
        %v937 = vpack.c.b16 %v905, %v905
        %v938 = vpack.c.b16 %v906, %v906
        %v939 = vpack.c.b16 %v907, %v907
        %v940 = vpack.c.b16 %v908, %v908
        %v941 = vpack.c.b16 %v909, %v909
        %v942 = vpack.c.b16 %v910, %v910
        %v943 = vpack.c.b16 %v911, %v911
        %v944 = vpack.c.b16 %v912, %v912
        %v945 = vpack.c.b16 %v913, %v913
        %v946 = vpack.c.b16 %v914, %v914
        %v947 = vpack.c.b16 %v915, %v915
        %v948 = vpack.c.b16 %v916, %v916
        %981 = vst [vmem:[%s176] sm:$0xf] %v917
        %982 = vst [vmem:[%s176 + $0x4] sm:$0xf] %v918
        %983 = vst [vmem:[%s176 + $0x8] sm:$0xf] %v919
        %984 = vst [vmem:[%s176 + $0xc] sm:$0xf] %v920
        %985 = vst [vmem:[%s176 + $0x10] sm:$0xf] %v921
        %986 = vst [vmem:[%s176 + $0x14] sm:$0xf] %v922
        %987 = vst [vmem:[%s176 + $0x18] sm:$0xf] %v923
        %988 = vst [vmem:[%s176 + $0x1c] sm:$0xf] %v924
        %989 = vst [vmem:[%s176 + $0x20] sm:$0xf] %v925
        %990 = vst [vmem:[%s176 + $0x24] sm:$0xf] %v926
        %991 = vst [vmem:[%s176 + $0x28] sm:$0xf] %v927
        %992 = vst [vmem:[%s176 + $0x2c] sm:$0xf] %v928
        %993 = vst [vmem:[%s176 + $0x30] sm:$0xf] %v929
        %994 = vst [vmem:[%s176 + $0x34] sm:$0xf] %v930
        %995 = vst [vmem:[%s176 + $0x38] sm:$0xf] %v931
        %996 = vst [vmem:[%s176 + $0x3c] sm:$0xf] %v932
        %997 = vst [vmem:[%s176 + $0x40] sm:$0xf] %v933
        %998 = vst [vmem:[%s176 + $0x44] sm:$0xf] %v934
        %999 = vst [vmem:[%s176 + $0x48] sm:$0xf] %v935
        %1000 = vst [vmem:[%s176 + $0x4c] sm:$0xf] %v936
        %1001 = vst [vmem:[%s176 + $0x50] sm:$0xf] %v937
        %1002 = vst [vmem:[%s176 + $0x54] sm:$0xf] %v938
        %1003 = vst [vmem:[%s176 + $0x58] sm:$0xf] %v939
        %1004 = vst [vmem:[%s176 + $0x5c] sm:$0xf] %v940
        %1005 = vst [vmem:[%s176 + $0x60] sm:$0xf] %v941
        %1006 = vst [vmem:[%s176 + $0x64] sm:$0xf] %v942
        %1007 = vst [vmem:[%s176 + $0x68] sm:$0xf] %v943
        %1008 = vst [vmem:[%s176 + $0x6c] sm:$0xf] %v944
        %1009 = vst [vmem:[%s176 + $0x70] sm:$0xf] %v945
        %1010 = vst [vmem:[%s176 + $0x74] sm:$0xf] %v946
        %1011 = vst [vmem:[%s176 + $0x78] sm:$0xf] %v947
        %1012 = vst [vmem:[%s176 + $0x7c] sm:$0xf] %v948
        %s1013 = sand.u32 %s93, 1
        %s1014 = scalar_lea.sflag [#allocation3], %s1013
        %s1015 = sand.u32 %s93, 1
        %s1016 = smul.addr %s1015, 128
        %s1017 = scalar_lea.vmem [#allocation2], %s1016
        // Predicated region
        $region33: #{tpu_custom_call.1} parent=31 // pred_check
          %p1018 = pneg %p103
        $region34: #{tpu_custom_call.1} parent=31 // pred_check_branch
          %1020 = sbr.rel (%p1018) target = $region36
        $region35: #{tpu_custom_call.1} parent=31 // pred_region
          %s1021 = smul.u32 32, %s17
          %s1022 = ssub.s32 63, %s1021
          %p1023 = scmp.lt.s32.totalorder %s1022, 32
          %s1024 = scalar_select %p1023, %s1022, 32
          %s1025 = smul.u32 64, %s1024
          %s1027 = ssub.s32 2048, %s1025
          %1028 = vsyncadd %s1014, %s1027
          %p1029 = scmp.ne.s32.totalorder 0, %s1025
          %s1030 = smul.addr %s1021, 64
          %s1031 = scalar_lea.hbm %s3, %s1030
          %s1032 = smul.u32 4, %s1024
          %s1033 = sshll.u32 %s1017, 4
          %s1034 = int_to_ptr.vmem [resolvable:$true] %s1033
          %s1035 = sshll.u32 %s1032, 4
          %1039 = dma.vmem_to_hbm [thread:$0]  (%p1029), %s1034, %s1035, %s1031, %s1014, 64, 64, 4
        $region36: #{tpu_custom_call.1} parent=31 // pred_fallthru
          _
      $region32: #{tpu_custom_call.1} parent=5 // pred_fallthru
        _
      %p1040 = scmp.le.s32.totalorder 2, %s12
      // Predicated region
      $region37: #{tpu_custom_call.1} parent=5 // pred_check
        %p1041 = pneg %p1040
      $region38: #{tpu_custom_call.1} parent=5 // pred_check_branch
        %1043 = sbr.rel (%p1041) target = $region40
      $region39: #{tpu_custom_call.1} parent=5 // pred_region
        %s1044 = ssub.s32 %s12, 2
        // Predicated region
        $region41: #{tpu_custom_call.1} parent=39 // pred_check
          %p1045 = pneg %p109
        $region42: #{tpu_custom_call.1} parent=39 // pred_check_branch
          %1047 = sbr.rel (%p1045) target = $region44
        $region43: #{tpu_custom_call.1} parent=39 // pred_region
          %s1048 = sand.u32 %s94, 1
          %s1049 = scalar_lea.sflag [#allocation3], %s1048
          %s1050 = sand.u32 %s94, 1
          %s1051 = smul.addr %s1050, 128
          %s1052 = scalar_lea.vmem [#allocation2], %s1051
          %1053 = dma.done %s1049, 2048
        $region44: #{tpu_custom_call.1} parent=39 // pred_fallthru
          _
      $region40: #{tpu_custom_call.1} parent=5 // pred_fallthru
        _
    $region6: #{tpu_custom_call.1} parent=1 // loop_footer
      %s16 = sadd.s32 1, %s12
    $region7: #{tpu_custom_call.1} parent=1 // loop_footer_branch
      %11 = sbr.rel target = $region3
    $region8: #{tpu_custom_call.1} parent=1 // loop_exit
      _
    %1054 = vsyncpa [#allocation3], 1
    %s1055 = scalar_lea.sflag [#allocation3], 1
    %1056 = vsyncpa %s1055, 1

</llo_original>
